<compile_context>
chip_gen: v5e
topology: v5e:2x2
jax: 0.10.0
libtpu: 0.0.40
codegen_flags: <defaults>
</compile_context>

<pallas_src>
import functools

import jax
import jax.numpy as jnp
from jax.experimental import pallas as pl
from jax.experimental.pallas import tpu as pltpu  # noqa: F401  (not needed at this size)

CHANNELS = [3, 5, 10, 5, 2]   # per-layer Cin -> Cout chain (3->5->10->5->2)
NUM_LAYERS = 4
K = 3                         # 3x3 convs, stride 1, VALID padding
CP = 16                       # padded channel count (multiple of 8), all layers


# ----------------------------- Pallas kernel ------------------------------- #

def _model_kernel(x_ref, w_ref, b_ref, out_ref, *, row_stride):
    """All 4 fused conv layers in one invocation, transposed lane-dense layout.

    x_ref:   (CP, M)           channel-major flat activation, M = B*H*W (lanes)
    w_ref:   (4, 2*CP, 9*CP)   fused (main ++ residual) weights, zero-padded
    b_ref:   (4, 2*CP, 1)      fused biases, zero-padded
    out_ref: (CP, M)           final activation; channels >= 2 and border
                               positions are padding/garbage (cropped outside)
    """
    x = x_ref[...]                                   # (CP, M) f32
    for layer in range(NUM_LAYERS):
        w = w_ref[layer]                             # (2*CP, 9*CP)
        b = b_ref[layer]                             # (2*CP, 1)

        # Transposed im2col: 9 left-shifted copies of the flat activation,
        # stacked on the SUBLANE axis at offsets that are multiples of CP=16
        # (8-aligned).  Wrap-around values only land on invalid border
        # positions, which are never read when producing valid outputs.
        taps = []
        for kh in range(K):
            for kw in range(K):
                d = kh * row_stride + kw
                if d == 0:
                    taps.append(x)
                else:
                    # left-shift by d (== jnp.roll(x, -d, axis=1)); written as
                    # slice+concat so the shift direction is unambiguous.
                    taps.append(jnp.concatenate([x[:, d:], x[:, :d]], axis=1))
        patches = jnp.concatenate(taps, axis=0)      # (9*CP, M), lane-dense

        y = jnp.dot(w, patches,
                    preferred_element_type=jnp.float32) + b   # (2*CP, M)

        # main branch (Conv2d + ReLU) in sublanes [0, CP), residual branch in
        # [CP, 2*CP): an 8-aligned sublane split, no cross-lane work.  Padded
        # output channels are exactly 0 (zero weights + zero bias).
        x = jnp.maximum(y[:CP], 0.0) + y[CP:]        # (CP, M)

    out_ref[...] = x                                 # single unmasked store


def resnet_model_pallas(image_nchw, w_all, b_all):
    """Equivalent of resnet.model(image): returns (roll_angle, pitch_angle, feat)."""
    B, C, H, W = image_nchw.shape
    assert C == CHANNELS[0]
    M = B * H * W
    Ho, Wo = H - 2 * NUM_LAYERS, W - 2 * NUM_LAYERS

    # Wrapper-side relayout (XLA handles this well): NCHW -> channel-major flat
    # (CP, M) with the flat spatial index on lanes, zero-padded to CP channels.
    x_t = jnp.transpose(image_nchw.astype(jnp.float32),
                        (1, 0, 2, 3)).reshape(C, M)
    x_t = jnp.pad(x_t, ((0, CP - C), (0, 0)))                     # (CP, M)

    out = pl.pallas_call(
        functools.partial(_model_kernel, row_stride=W),
        out_shape=jax.ShapeDtypeStruct((CP, M), jnp.float32),
    )(x_t, w_all, b_all)

    # Crop valid channels / valid spatial positions, restore NCHW (wrapper).
    feat = out[:CHANNELS[-1]].reshape(CHANNELS[-1], B, H, W)[:, :, :Ho, :Wo]
    feat = jnp.transpose(feat, (1, 0, 2, 3))                      # (B, 2, Ho, Wo)

    # image.view(B, 2, -1)[:, c].max()  ==  max over batch+spatial per channel
    roll_angle = jnp.max(feat[:, 0])
    pitch_angle = jnp.max(feat[:, 1])
    return roll_angle, pitch_angle, feat


# --------------------------- forward() semantics ---------------------------- #

def resnet_forward(height, image, keypoint_coords):
    """Exact reproduction of resnet.forward (scalar keypoint geometry)."""
    del image  # unused, exactly as in the PyTorch forward
    kp = jnp.asarray(keypoint_coords, jnp.float32)
    left_eye = kp[1, :2]
    right_eye = kp[2, :2]
    left_shoulder = kp[5, :2]
    right_shoulder = kp[6, :2]

    eye_vector = right_eye - left_eye
    roll = jnp.arctan2(eye_vector[1], eye_vector[0]) * (180.0 / jnp.pi)
    roll = jnp.where(roll > 180.0, roll - 360.0, roll)
    roll = roll + 90.0

    shoulder_mid = (left_shoulder + right_shoulder) / 2.0
    eye_mid = (left_eye + right_eye) / 2.0
    mid_vector = eye_mid - shoulder_mid
    pitch = jnp.arctan2(mid_vector[1], mid_vector[0]) * (180.0 / jnp.pi) - roll
    pitch = -pitch
    pitch = pitch + 180.0
    pitch = jnp.where(pitch > 180.0, pitch - 360.0, pitch)
    pitch = pitch + height / 30.0
    return roll, pitch


# --------------------------- param init / packing --------------------------- #

def init_params(key):
    """Deterministic synthetic weights in PyTorch shapes (OIHW + bias)."""
    raw = []
    for layer in range(NUM_LAYERS):
        cin, cout = CHANNELS[layer], CHANNELS[layer + 1]
        key, k1, k2, k3, k4 = jax.random.split(key, 5)
        w = 0.1 * jax.random.normal(k1, (cout, cin, K, K), jnp.float32)
        b = 0.1 * jax.random.normal(k2, (cout,), jnp.float32)
        rw = 0.1 * jax.random.normal(k3, (cout, cin, K, K), jnp.float32)
        rb = 0.1 * jax.random.normal(k4, (cout,), jnp.float32)
        raw.append((w, b, rw, rb))
    return raw


def pack_params(raw):
    """Host-side fusion + padding into TWO tensors.

    w_all[l, br*CP + o, (kh*3 + kw)*CP + c] = w_br[o, c, kh, kw]   (else 0)
    b_all[l, br*CP + o, 0]                  = b_br[o]              (else 0)
    br = 0 -> main conv (ReLU branch), br = 1 -> residual conv.
    """
    w_all = jnp.zeros((NUM_LAYERS, 2 * CP, K * K * CP), jnp.float32)
    b_all = jnp.zeros((NUM_LAYERS, 2 * CP, 1), jnp.float32)
    for l, (w, b, rw, rb) in enumerate(raw):
        cout, cin = w.shape[0], w.shape[1]
        for br, (ww, bb) in enumerate(((w, b), (rw, rb))):
            wt = jnp.transpose(ww, (0, 2, 3, 1)).reshape(cout, K * K, cin)
            wt = jnp.pad(wt, ((0, 0), (0, 0), (0, CP - cin)))
            wt = wt.reshape(cout, K * K * CP)
            w_all = w_all.at[l, br * CP:br * CP + cout, :].set(wt)
            b_all = b_all.at[l, br * CP:br * CP + cout, 0].set(bb)
    return w_all, b_all


# ------------------------------ pure-JAX reference --------------------------- #

def _model_ref(image_nchw, raw_params):
    """Pure-JAX reference of resnet.model for validating the kernel."""
    x = image_nchw.astype(jnp.float32)

    def conv(x, w, b):
        y = jax.lax.conv_general_dilated(
            x, w, (1, 1), "VALID",
            dimension_numbers=("NCHW", "OIHW", "NCHW"))
        return y + b.reshape(1, -1, 1, 1)

    for (w, b, rw, rb) in raw_params:
        x = jnp.maximum(conv(x, w, b), 0.0) + conv(x, rw, rb)
    roll = jnp.max(x[:, 0])
    pitch = jnp.max(x[:, 1])
    return roll, pitch, x


# ---------------------------------- main ------------------------------------ #

if __name__ == "__main__":
    key = jax.random.PRNGKey(0)
    k_img, k_kp, k_par = jax.random.split(key, 3)

    B, C, H, W = 2, 3, 16, 16
    image = jax.random.normal(k_img, (B, C, H, W), jnp.float32)
    keypoint_coords = 10.0 * jax.random.normal(k_kp, (17, 2), jnp.float32)
    height = 170.0

    raw_params = init_params(k_par)
    w_all, b_all = pack_params(raw_params)

    # forward(): exact scalar keypoint geometry (ignores image, like PyTorch)
    roll_f, pitch_f = resnet_forward(height, image, keypoint_coords)

    # model(): single-invocation, lane-dense Pallas conv-stack kernel
    roll_m, pitch_m, feat = resnet_model_pallas(image, w_all, b_all)
    jax.block_until_ready((roll_f, pitch_f, roll_m, pitch_m, feat))

    # validate kernel against pure-JAX reference
    roll_r, pitch_r, feat_r = _model_ref(image, raw_params)
    assert jnp.allclose(feat, feat_r, atol=1e-3, rtol=1e-3)
    assert jnp.allclose(roll_m, roll_r, atol=1e-3, rtol=1e-3)
    assert jnp.allclose(pitch_m, pitch_r, atol=1e-3, rtol=1e-3)

    print("KERNEL_OK")
</pallas_src>

<mosaic_0001>
module attributes {stable_mosaic.version = 11 : i64} {
  func.func @_model_kernel(%arg0: memref<16x512xf32, #tpu.memory_space<vmem>>, %arg1: memref<4x32x144xf32, #tpu.memory_space<vmem>>, %arg2: memref<4x32x1xf32, #tpu.memory_space<vmem>>, %arg3: memref<16x512xf32, #tpu.memory_space<vmem>>) attributes {dimension_semantics = [], scalar_prefetch = 0 : i64, scratch_operands = 0 : i64, tpu.core_type = #tpu.core_type<tc>} {
    %c0 = arith.constant 0 : index
    %c0_0 = arith.constant 0 : index
    %0 = vector.load %arg0[%c0, %c0_0] : memref<16x512xf32, #tpu.memory_space<vmem>>, vector<16x512xf32>
    %c0_1 = arith.constant 0 : index
    %c0_2 = arith.constant 0 : index
    %c0_3 = arith.constant 0 : index
    %1 = vector.load %arg1[%c0_1, %c0_2, %c0_3] : memref<4x32x144xf32, #tpu.memory_space<vmem>>, vector<1x32x144xf32>
    %2 = vector.shape_cast %1 : vector<1x32x144xf32> to vector<32x144xf32>
    %c0_4 = arith.constant 0 : index
    %c0_5 = arith.constant 0 : index
    %c0_6 = arith.constant 0 : index
    %3 = vector.load %arg2[%c0_4, %c0_5, %c0_6] : memref<4x32x1xf32, #tpu.memory_space<vmem>>, vector<1x32x1xf32>
    %4 = vector.shape_cast %3 : vector<1x32x1xf32> to vector<32x1xf32>
    %5 = vector.extract_strided_slice %0 {offsets = [0, 1], sizes = [16, 511], strides = [1, 1]} : vector<16x512xf32> to vector<16x511xf32>
    %6 = vector.extract_strided_slice %0 {offsets = [0, 0], sizes = [16, 1], strides = [1, 1]} : vector<16x512xf32> to vector<16x1xf32>
    %7 = tpu.concatenate %5, %6 in 1 : vector<16x511xf32>, vector<16x1xf32> -> vector<16x512xf32>
    %8 = vector.extract_strided_slice %0 {offsets = [0, 2], sizes = [16, 510], strides = [1, 1]} : vector<16x512xf32> to vector<16x510xf32>
    %9 = vector.extract_strided_slice %0 {offsets = [0, 0], sizes = [16, 2], strides = [1, 1]} : vector<16x512xf32> to vector<16x2xf32>
    %10 = tpu.concatenate %8, %9 in 1 : vector<16x510xf32>, vector<16x2xf32> -> vector<16x512xf32>
    %11 = vector.extract_strided_slice %0 {offsets = [0, 16], sizes = [16, 496], strides = [1, 1]} : vector<16x512xf32> to vector<16x496xf32>
    %12 = vector.extract_strided_slice %0 {offsets = [0, 0], sizes = [16, 16], strides = [1, 1]} : vector<16x512xf32> to vector<16x16xf32>
    %13 = tpu.concatenate %11, %12 in 1 : vector<16x496xf32>, vector<16x16xf32> -> vector<16x512xf32>
    %14 = vector.extract_strided_slice %0 {offsets = [0, 17], sizes = [16, 495], strides = [1, 1]} : vector<16x512xf32> to vector<16x495xf32>
    %15 = vector.extract_strided_slice %0 {offsets = [0, 0], sizes = [16, 17], strides = [1, 1]} : vector<16x512xf32> to vector<16x17xf32>
    %16 = tpu.concatenate %14, %15 in 1 : vector<16x495xf32>, vector<16x17xf32> -> vector<16x512xf32>
    %17 = vector.extract_strided_slice %0 {offsets = [0, 18], sizes = [16, 494], strides = [1, 1]} : vector<16x512xf32> to vector<16x494xf32>
    %18 = vector.extract_strided_slice %0 {offsets = [0, 0], sizes = [16, 18], strides = [1, 1]} : vector<16x512xf32> to vector<16x18xf32>
    %19 = tpu.concatenate %17, %18 in 1 : vector<16x494xf32>, vector<16x18xf32> -> vector<16x512xf32>
    %20 = vector.extract_strided_slice %0 {offsets = [0, 32], sizes = [16, 480], strides = [1, 1]} : vector<16x512xf32> to vector<16x480xf32>
    %21 = vector.extract_strided_slice %0 {offsets = [0, 0], sizes = [16, 32], strides = [1, 1]} : vector<16x512xf32> to vector<16x32xf32>
    %22 = tpu.concatenate %20, %21 in 1 : vector<16x480xf32>, vector<16x32xf32> -> vector<16x512xf32>
    %23 = vector.extract_strided_slice %0 {offsets = [0, 33], sizes = [16, 479], strides = [1, 1]} : vector<16x512xf32> to vector<16x479xf32>
    %24 = vector.extract_strided_slice %0 {offsets = [0, 0], sizes = [16, 33], strides = [1, 1]} : vector<16x512xf32> to vector<16x33xf32>
    %25 = tpu.concatenate %23, %24 in 1 : vector<16x479xf32>, vector<16x33xf32> -> vector<16x512xf32>
    %26 = vector.extract_strided_slice %0 {offsets = [0, 34], sizes = [16, 478], strides = [1, 1]} : vector<16x512xf32> to vector<16x478xf32>
    %27 = vector.extract_strided_slice %0 {offsets = [0, 0], sizes = [16, 34], strides = [1, 1]} : vector<16x512xf32> to vector<16x34xf32>
    %28 = tpu.concatenate %26, %27 in 1 : vector<16x478xf32>, vector<16x34xf32> -> vector<16x512xf32>
    %29 = tpu.concatenate %0, %7, %10, %13, %16, %19, %22, %25, %28 in 0 : vector<16x512xf32>, vector<16x512xf32>, vector<16x512xf32>, vector<16x512xf32>, vector<16x512xf32>, vector<16x512xf32>, vector<16x512xf32>, vector<16x512xf32>, vector<16x512xf32> -> vector<144x512xf32>
    %cst = arith.constant dense<0.000000e+00> : vector<32x512xf32>
    %30 = tpu.matmul %2, %29, %cst {dimension_numbers = #tpu.dot_dimension_numbers<[1], [0], [0], [1], [0, 0, 1, 1], [], []>} : vector<32x144xf32>, vector<144x512xf32>, vector<32x512xf32> -> vector<32x512xf32>
    %31 = vector.broadcast %4 : vector<32x1xf32> to vector<32x512xf32>
    %32 = arith.addf %30, %31 : vector<32x512xf32>
    %33 = vector.extract_strided_slice %32 {offsets = [0, 0], sizes = [16, 512], strides = [1, 1]} : vector<32x512xf32> to vector<16x512xf32>
    %cst_7 = arith.constant 0.000000e+00 : f32
    %34 = vector.broadcast %cst_7 : f32 to vector<16x512xf32>
    %35 = arith.maximumf %33, %34 : vector<16x512xf32>
    %36 = vector.extract_strided_slice %32 {offsets = [16, 0], sizes = [16, 512], strides = [1, 1]} : vector<32x512xf32> to vector<16x512xf32>
    %37 = arith.addf %35, %36 : vector<16x512xf32>
    %c1 = arith.constant 1 : index
    %c0_8 = arith.constant 0 : index
    %c0_9 = arith.constant 0 : index
    %38 = vector.load %arg1[%c1, %c0_8, %c0_9] : memref<4x32x144xf32, #tpu.memory_space<vmem>>, vector<1x32x144xf32>
    %39 = vector.shape_cast %38 : vector<1x32x144xf32> to vector<32x144xf32>
    %c1_10 = arith.constant 1 : index
    %c0_11 = arith.constant 0 : index
    %c0_12 = arith.constant 0 : index
    %40 = vector.load %arg2[%c1_10, %c0_11, %c0_12] : memref<4x32x1xf32, #tpu.memory_space<vmem>>, vector<1x32x1xf32>
    %41 = vector.shape_cast %40 : vector<1x32x1xf32> to vector<32x1xf32>
    %42 = vector.extract_strided_slice %37 {offsets = [0, 1], sizes = [16, 511], strides = [1, 1]} : vector<16x512xf32> to vector<16x511xf32>
    %43 = vector.extract_strided_slice %37 {offsets = [0, 0], sizes = [16, 1], strides = [1, 1]} : vector<16x512xf32> to vector<16x1xf32>
    %44 = tpu.concatenate %42, %43 in 1 : vector<16x511xf32>, vector<16x1xf32> -> vector<16x512xf32>
    %45 = vector.extract_strided_slice %37 {offsets = [0, 2], sizes = [16, 510], strides = [1, 1]} : vector<16x512xf32> to vector<16x510xf32>
    %46 = vector.extract_strided_slice %37 {offsets = [0, 0], sizes = [16, 2], strides = [1, 1]} : vector<16x512xf32> to vector<16x2xf32>
    %47 = tpu.concatenate %45, %46 in 1 : vector<16x510xf32>, vector<16x2xf32> -> vector<16x512xf32>
    %48 = vector.extract_strided_slice %37 {offsets = [0, 16], sizes = [16, 496], strides = [1, 1]} : vector<16x512xf32> to vector<16x496xf32>
    %49 = vector.extract_strided_slice %37 {offsets = [0, 0], sizes = [16, 16], strides = [1, 1]} : vector<16x512xf32> to vector<16x16xf32>
    %50 = tpu.concatenate %48, %49 in 1 : vector<16x496xf32>, vector<16x16xf32> -> vector<16x512xf32>
    %51 = vector.extract_strided_slice %37 {offsets = [0, 17], sizes = [16, 495], strides = [1, 1]} : vector<16x512xf32> to vector<16x495xf32>
    %52 = vector.extract_strided_slice %37 {offsets = [0, 0], sizes = [16, 17], strides = [1, 1]} : vector<16x512xf32> to vector<16x17xf32>
    %53 = tpu.concatenate %51, %52 in 1 : vector<16x495xf32>, vector<16x17xf32> -> vector<16x512xf32>
    %54 = vector.extract_strided_slice %37 {offsets = [0, 18], sizes = [16, 494], strides = [1, 1]} : vector<16x512xf32> to vector<16x494xf32>
    %55 = vector.extract_strided_slice %37 {offsets = [0, 0], sizes = [16, 18], strides = [1, 1]} : vector<16x512xf32> to vector<16x18xf32>
    %56 = tpu.concatenate %54, %55 in 1 : vector<16x494xf32>, vector<16x18xf32> -> vector<16x512xf32>
    %57 = vector.extract_strided_slice %37 {offsets = [0, 32], sizes = [16, 480], strides = [1, 1]} : vector<16x512xf32> to vector<16x480xf32>
    %58 = vector.extract_strided_slice %37 {offsets = [0, 0], sizes = [16, 32], strides = [1, 1]} : vector<16x512xf32> to vector<16x32xf32>
    %59 = tpu.concatenate %57, %58 in 1 : vector<16x480xf32>, vector<16x32xf32> -> vector<16x512xf32>
    %60 = vector.extract_strided_slice %37 {offsets = [0, 33], sizes = [16, 479], strides = [1, 1]} : vector<16x512xf32> to vector<16x479xf32>
    %61 = vector.extract_strided_slice %37 {offsets = [0, 0], sizes = [16, 33], strides = [1, 1]} : vector<16x512xf32> to vector<16x33xf32>
    %62 = tpu.concatenate %60, %61 in 1 : vector<16x479xf32>, vector<16x33xf32> -> vector<16x512xf32>
    %63 = vector.extract_strided_slice %37 {offsets = [0, 34], sizes = [16, 478], strides = [1, 1]} : vector<16x512xf32> to vector<16x478xf32>
    %64 = vector.extract_strided_slice %37 {offsets = [0, 0], sizes = [16, 34], strides = [1, 1]} : vector<16x512xf32> to vector<16x34xf32>
    %65 = tpu.concatenate %63, %64 in 1 : vector<16x478xf32>, vector<16x34xf32> -> vector<16x512xf32>
    %66 = tpu.concatenate %37, %44, %47, %50, %53, %56, %59, %62, %65 in 0 : vector<16x512xf32>, vector<16x512xf32>, vector<16x512xf32>, vector<16x512xf32>, vector<16x512xf32>, vector<16x512xf32>, vector<16x512xf32>, vector<16x512xf32>, vector<16x512xf32> -> vector<144x512xf32>
    %cst_13 = arith.constant dense<0.000000e+00> : vector<32x512xf32>
    %67 = tpu.matmul %39, %66, %cst_13 {dimension_numbers = #tpu.dot_dimension_numbers<[1], [0], [0], [1], [0, 0, 1, 1], [], []>} : vector<32x144xf32>, vector<144x512xf32>, vector<32x512xf32> -> vector<32x512xf32>
    %68 = vector.broadcast %41 : vector<32x1xf32> to vector<32x512xf32>
    %69 = arith.addf %67, %68 : vector<32x512xf32>
    %70 = vector.extract_strided_slice %69 {offsets = [0, 0], sizes = [16, 512], strides = [1, 1]} : vector<32x512xf32> to vector<16x512xf32>
    %cst_14 = arith.constant 0.000000e+00 : f32
    %71 = vector.broadcast %cst_14 : f32 to vector<16x512xf32>
    %72 = arith.maximumf %70, %71 : vector<16x512xf32>
    %73 = vector.extract_strided_slice %69 {offsets = [16, 0], sizes = [16, 512], strides = [1, 1]} : vector<32x512xf32> to vector<16x512xf32>
    %74 = arith.addf %72, %73 : vector<16x512xf32>
    %c2 = arith.constant 2 : index
    %c0_15 = arith.constant 0 : index
    %c0_16 = arith.constant 0 : index
    %75 = vector.load %arg1[%c2, %c0_15, %c0_16] : memref<4x32x144xf32, #tpu.memory_space<vmem>>, vector<1x32x144xf32>
    %76 = vector.shape_cast %75 : vector<1x32x144xf32> to vector<32x144xf32>
    %c2_17 = arith.constant 2 : index
    %c0_18 = arith.constant 0 : index
    %c0_19 = arith.constant 0 : index
    %77 = vector.load %arg2[%c2_17, %c0_18, %c0_19] : memref<4x32x1xf32, #tpu.memory_space<vmem>>, vector<1x32x1xf32>
    %78 = vector.shape_cast %77 : vector<1x32x1xf32> to vector<32x1xf32>
    %79 = vector.extract_strided_slice %74 {offsets = [0, 1], sizes = [16, 511], strides = [1, 1]} : vector<16x512xf32> to vector<16x511xf32>
    %80 = vector.extract_strided_slice %74 {offsets = [0, 0], sizes = [16, 1], strides = [1, 1]} : vector<16x512xf32> to vector<16x1xf32>
    %81 = tpu.concatenate %79, %80 in 1 : vector<16x511xf32>, vector<16x1xf32> -> vector<16x512xf32>
    %82 = vector.extract_strided_slice %74 {offsets = [0, 2], sizes = [16, 510], strides = [1, 1]} : vector<16x512xf32> to vector<16x510xf32>
    %83 = vector.extract_strided_slice %74 {offsets = [0, 0], sizes = [16, 2], strides = [1, 1]} : vector<16x512xf32> to vector<16x2xf32>
    %84 = tpu.concatenate %82, %83 in 1 : vector<16x510xf32>, vector<16x2xf32> -> vector<16x512xf32>
    %85 = vector.extract_strided_slice %74 {offsets = [0, 16], sizes = [16, 496], strides = [1, 1]} : vector<16x512xf32> to vector<16x496xf32>
    %86 = vector.extract_strided_slice %74 {offsets = [0, 0], sizes = [16, 16], strides = [1, 1]} : vector<16x512xf32> to vector<16x16xf32>
    %87 = tpu.concatenate %85, %86 in 1 : vector<16x496xf32>, vector<16x16xf32> -> vector<16x512xf32>
    %88 = vector.extract_strided_slice %74 {offsets = [0, 17], sizes = [16, 495], strides = [1, 1]} : vector<16x512xf32> to vector<16x495xf32>
    %89 = vector.extract_strided_slice %74 {offsets = [0, 0], sizes = [16, 17], strides = [1, 1]} : vector<16x512xf32> to vector<16x17xf32>
    %90 = tpu.concatenate %88, %89 in 1 : vector<16x495xf32>, vector<16x17xf32> -> vector<16x512xf32>
    %91 = vector.extract_strided_slice %74 {offsets = [0, 18], sizes = [16, 494], strides = [1, 1]} : vector<16x512xf32> to vector<16x494xf32>
    %92 = vector.extract_strided_slice %74 {offsets = [0, 0], sizes = [16, 18], strides = [1, 1]} : vector<16x512xf32> to vector<16x18xf32>
    %93 = tpu.concatenate %91, %92 in 1 : vector<16x494xf32>, vector<16x18xf32> -> vector<16x512xf32>
    %94 = vector.extract_strided_slice %74 {offsets = [0, 32], sizes = [16, 480], strides = [1, 1]} : vector<16x512xf32> to vector<16x480xf32>
    %95 = vector.extract_strided_slice %74 {offsets = [0, 0], sizes = [16, 32], strides = [1, 1]} : vector<16x512xf32> to vector<16x32xf32>
    %96 = tpu.concatenate %94, %95 in 1 : vector<16x480xf32>, vector<16x32xf32> -> vector<16x512xf32>
    %97 = vector.extract_strided_slice %74 {offsets = [0, 33], sizes = [16, 479], strides = [1, 1]} : vector<16x512xf32> to vector<16x479xf32>
    %98 = vector.extract_strided_slice %74 {offsets = [0, 0], sizes = [16, 33], strides = [1, 1]} : vector<16x512xf32> to vector<16x33xf32>
    %99 = tpu.concatenate %97, %98 in 1 : vector<16x479xf32>, vector<16x33xf32> -> vector<16x512xf32>
    %100 = vector.extract_strided_slice %74 {offsets = [0, 34], sizes = [16, 478], strides = [1, 1]} : vector<16x512xf32> to vector<16x478xf32>
    %101 = vector.extract_strided_slice %74 {offsets = [0, 0], sizes = [16, 34], strides = [1, 1]} : vector<16x512xf32> to vector<16x34xf32>
    %102 = tpu.concatenate %100, %101 in 1 : vector<16x478xf32>, vector<16x34xf32> -> vector<16x512xf32>
    %103 = tpu.concatenate %74, %81, %84, %87, %90, %93, %96, %99, %102 in 0 : vector<16x512xf32>, vector<16x512xf32>, vector<16x512xf32>, vector<16x512xf32>, vector<16x512xf32>, vector<16x512xf32>, vector<16x512xf32>, vector<16x512xf32>, vector<16x512xf32> -> vector<144x512xf32>
    %cst_20 = arith.constant dense<0.000000e+00> : vector<32x512xf32>
    %104 = tpu.matmul %76, %103, %cst_20 {dimension_numbers = #tpu.dot_dimension_numbers<[1], [0], [0], [1], [0, 0, 1, 1], [], []>} : vector<32x144xf32>, vector<144x512xf32>, vector<32x512xf32> -> vector<32x512xf32>
    %105 = vector.broadcast %78 : vector<32x1xf32> to vector<32x512xf32>
    %106 = arith.addf %104, %105 : vector<32x512xf32>
    %107 = vector.extract_strided_slice %106 {offsets = [0, 0], sizes = [16, 512], strides = [1, 1]} : vector<32x512xf32> to vector<16x512xf32>
    %cst_21 = arith.constant 0.000000e+00 : f32
    %108 = vector.broadcast %cst_21 : f32 to vector<16x512xf32>
    %109 = arith.maximumf %107, %108 : vector<16x512xf32>
    %110 = vector.extract_strided_slice %106 {offsets = [16, 0], sizes = [16, 512], strides = [1, 1]} : vector<32x512xf32> to vector<16x512xf32>
    %111 = arith.addf %109, %110 : vector<16x512xf32>
    %c3 = arith.constant 3 : index
    %c0_22 = arith.constant 0 : index
    %c0_23 = arith.constant 0 : index
    %112 = vector.load %arg1[%c3, %c0_22, %c0_23] : memref<4x32x144xf32, #tpu.memory_space<vmem>>, vector<1x32x144xf32>
    %113 = vector.shape_cast %112 : vector<1x32x144xf32> to vector<32x144xf32>
    %c3_24 = arith.constant 3 : index
    %c0_25 = arith.constant 0 : index
    %c0_26 = arith.constant 0 : index
    %114 = vector.load %arg2[%c3_24, %c0_25, %c0_26] : memref<4x32x1xf32, #tpu.memory_space<vmem>>, vector<1x32x1xf32>
    %115 = vector.shape_cast %114 : vector<1x32x1xf32> to vector<32x1xf32>
    %116 = vector.extract_strided_slice %111 {offsets = [0, 1], sizes = [16, 511], strides = [1, 1]} : vector<16x512xf32> to vector<16x511xf32>
    %117 = vector.extract_strided_slice %111 {offsets = [0, 0], sizes = [16, 1], strides = [1, 1]} : vector<16x512xf32> to vector<16x1xf32>
    %118 = tpu.concatenate %116, %117 in 1 : vector<16x511xf32>, vector<16x1xf32> -> vector<16x512xf32>
    %119 = vector.extract_strided_slice %111 {offsets = [0, 2], sizes = [16, 510], strides = [1, 1]} : vector<16x512xf32> to vector<16x510xf32>
    %120 = vector.extract_strided_slice %111 {offsets = [0, 0], sizes = [16, 2], strides = [1, 1]} : vector<16x512xf32> to vector<16x2xf32>
    %121 = tpu.concatenate %119, %120 in 1 : vector<16x510xf32>, vector<16x2xf32> -> vector<16x512xf32>
    %122 = vector.extract_strided_slice %111 {offsets = [0, 16], sizes = [16, 496], strides = [1, 1]} : vector<16x512xf32> to vector<16x496xf32>
    %123 = vector.extract_strided_slice %111 {offsets = [0, 0], sizes = [16, 16], strides = [1, 1]} : vector<16x512xf32> to vector<16x16xf32>
    %124 = tpu.concatenate %122, %123 in 1 : vector<16x496xf32>, vector<16x16xf32> -> vector<16x512xf32>
    %125 = vector.extract_strided_slice %111 {offsets = [0, 17], sizes = [16, 495], strides = [1, 1]} : vector<16x512xf32> to vector<16x495xf32>
    %126 = vector.extract_strided_slice %111 {offsets = [0, 0], sizes = [16, 17], strides = [1, 1]} : vector<16x512xf32> to vector<16x17xf32>
    %127 = tpu.concatenate %125, %126 in 1 : vector<16x495xf32>, vector<16x17xf32> -> vector<16x512xf32>
    %128 = vector.extract_strided_slice %111 {offsets = [0, 18], sizes = [16, 494], strides = [1, 1]} : vector<16x512xf32> to vector<16x494xf32>
    %129 = vector.extract_strided_slice %111 {offsets = [0, 0], sizes = [16, 18], strides = [1, 1]} : vector<16x512xf32> to vector<16x18xf32>
    %130 = tpu.concatenate %128, %129 in 1 : vector<16x494xf32>, vector<16x18xf32> -> vector<16x512xf32>
    %131 = vector.extract_strided_slice %111 {offsets = [0, 32], sizes = [16, 480], strides = [1, 1]} : vector<16x512xf32> to vector<16x480xf32>
    %132 = vector.extract_strided_slice %111 {offsets = [0, 0], sizes = [16, 32], strides = [1, 1]} : vector<16x512xf32> to vector<16x32xf32>
    %133 = tpu.concatenate %131, %132 in 1 : vector<16x480xf32>, vector<16x32xf32> -> vector<16x512xf32>
    %134 = vector.extract_strided_slice %111 {offsets = [0, 33], sizes = [16, 479], strides = [1, 1]} : vector<16x512xf32> to vector<16x479xf32>
    %135 = vector.extract_strided_slice %111 {offsets = [0, 0], sizes = [16, 33], strides = [1, 1]} : vector<16x512xf32> to vector<16x33xf32>
    %136 = tpu.concatenate %134, %135 in 1 : vector<16x479xf32>, vector<16x33xf32> -> vector<16x512xf32>
    %137 = vector.extract_strided_slice %111 {offsets = [0, 34], sizes = [16, 478], strides = [1, 1]} : vector<16x512xf32> to vector<16x478xf32>
    %138 = vector.extract_strided_slice %111 {offsets = [0, 0], sizes = [16, 34], strides = [1, 1]} : vector<16x512xf32> to vector<16x34xf32>
    %139 = tpu.concatenate %137, %138 in 1 : vector<16x478xf32>, vector<16x34xf32> -> vector<16x512xf32>
    %140 = tpu.concatenate %111, %118, %121, %124, %127, %130, %133, %136, %139 in 0 : vector<16x512xf32>, vector<16x512xf32>, vector<16x512xf32>, vector<16x512xf32>, vector<16x512xf32>, vector<16x512xf32>, vector<16x512xf32>, vector<16x512xf32>, vector<16x512xf32> -> vector<144x512xf32>
    %cst_27 = arith.constant dense<0.000000e+00> : vector<32x512xf32>
    %141 = tpu.matmul %113, %140, %cst_27 {dimension_numbers = #tpu.dot_dimension_numbers<[1], [0], [0], [1], [0, 0, 1, 1], [], []>} : vector<32x144xf32>, vector<144x512xf32>, vector<32x512xf32> -> vector<32x512xf32>
    %142 = vector.broadcast %115 : vector<32x1xf32> to vector<32x512xf32>
    %143 = arith.addf %141, %142 : vector<32x512xf32>
    %144 = vector.extract_strided_slice %143 {offsets = [0, 0], sizes = [16, 512], strides = [1, 1]} : vector<32x512xf32> to vector<16x512xf32>
    %cst_28 = arith.constant 0.000000e+00 : f32
    %145 = vector.broadcast %cst_28 : f32 to vector<16x512xf32>
    %146 = arith.maximumf %144, %145 : vector<16x512xf32>
    %147 = vector.extract_strided_slice %143 {offsets = [16, 0], sizes = [16, 512], strides = [1, 1]} : vector<32x512xf32> to vector<16x512xf32>
    %148 = arith.addf %146, %147 : vector<16x512xf32>
    %c0_29 = arith.constant 0 : index
    %c0_30 = arith.constant 0 : index
    %149 = vector.load %arg3[%c0_29, %c0_30] : memref<16x512xf32, #tpu.memory_space<vmem>>, vector<16x512xf32>
    tpu.vector_store %arg3[%c0_29, %c0_30], %148 {strides = array<i32>} : memref<16x512xf32, #tpu.memory_space<vmem>>, vector<16x512xf32>,
    return
  }
}

</mosaic_0001>

<llo_original>
// kernel: tpu_custom_call.1
$region0: #{tpu_custom_call.1}
  #allocation0 [shape = 'u32[]', space=smem, size = 0x4, offset = 0x4, fixed_abs, tag = 'smem constant byte address 0x4 - core index']
  #allocation1 [shape = 'u32[72,128]{1,0:T(1,128)}', space=vmem, size = 0x9000, scoped, tag = 'internal scratch']
  %s0 = inlined_call_operand.vmem [shape: f32[16,512], index: 0, kind: input, shape index: {}]
  %s1 = inlined_call_operand.hbm [shape: f32[4,32,144], index: 1, kind: input, shape index: {}]
  %s2 = inlined_call_operand.vmem [shape: f32[4,32,1], index: 2, kind: input, shape index: {}]
  %s3 = inlined_call_operand.hbm [shape: f32[16,512], index: 3, kind: output, shape index: {}]
  %s4 = sld [smem:[#allocation0]]
  $region26: #{tpu_custom_call.1} parent=0
    _
  %s6 = ssub.s32 1, %s4
  %s7 = scalar_select 0, %s6, %s4
  $region1: #{tpu_custom_call.1} parent=0
    #allocation2 [shape = 'u8[131072]{0}', space=vmem, size = 0x20000, scoped, tag = 'input window, operand 1, single buffered']
    #allocation3 [shape = 's32[1]{0}', space=sflag, size = 0x4, scoped, tag = 'scoped memory for tpu_custom_call.1']
    #allocation4 [shape = 's32[1]{0}', space=sflag, size = 0x4, scoped, tag = 'scoped memory for tpu_custom_call.1']
    #allocation5 [shape = 'u8[32768]{0}', space=vmem, size = 0x8000, scoped, tag = 'output window, operand 0, single buffered']
    %8 = vsyncpa [#allocation3], 0
    %9 = vsyncpa [#allocation4], 0
    // Predicated region
    $region2: #{tpu_custom_call.1} parent=1 // pred_check
      _
    $region3: #{tpu_custom_call.1} parent=1 // pred_check_branch
      %11 = sbr.rel (0) target = $region5
    $region4: #{tpu_custom_call.1} parent=1 // pred_region
      _
    $region5: #{tpu_custom_call.1} parent=1 // pred_fallthru
      _
    // Predicated region
    $region6: #{tpu_custom_call.1} parent=1 // pred_check
      _
    $region7: #{tpu_custom_call.1} parent=1 // pred_check_branch
      %13 = sbr.rel (0) target = $region9
    $region8: #{tpu_custom_call.1} parent=1 // pred_region
      %15 = vsyncadd [#allocation3], 0
      %s16 = sshll.u32 %s1, 4
      %s17 = int_to_ptr.hbm [resolvable:$true] %s16
      %s18 = sshll.u32 [#allocation2], 4
      %s19 = int_to_ptr.vmem [resolvable:$true] %s18
      %24 = dma.hbm_to_vmem [thread:$0]  %s17, 4096, %s19, [#allocation3], 256, 256, 16
    $region9: #{tpu_custom_call.1} parent=1 // pred_fallthru
      _
    // Predicated region
    $region10: #{tpu_custom_call.1} parent=1 // pred_check
      _
    $region11: #{tpu_custom_call.1} parent=1 // pred_check_branch
      %26 = sbr.rel (0) target = $region13
    $region12: #{tpu_custom_call.1} parent=1 // pred_region
      _
    $region13: #{tpu_custom_call.1} parent=1 // pred_fallthru
      _
    // Predicated region
    $region14: #{tpu_custom_call.1} parent=1 // pred_check
      _
    $region15: #{tpu_custom_call.1} parent=1 // pred_check_branch
      %28 = sbr.rel (0) target = $region17
    $region16: #{tpu_custom_call.1} parent=1 // pred_region
      %30 = dma.done [#allocation3], 4096
    $region17: #{tpu_custom_call.1} parent=1 // pred_fallthru
      _
    %v31 = vld [vmem:[%s0] sm:$0xff]
    %v32 = vld [vmem:[%s0 + $0x8] sm:$0xff]
    %v33 = vld [vmem:[%s0 + $0x10] sm:$0xff]
    %v34 = vld [vmem:[%s0 + $0x18] sm:$0xff]
    %v35 = vld [vmem:[%s0 + $0x20] sm:$0xff]
    %v36 = vld [vmem:[%s0 + $0x28] sm:$0xff]
    %v37 = vld [vmem:[%s0 + $0x30] sm:$0xff]
    %v38 = vld [vmem:[%s0 + $0x38] sm:$0xff]
    %v39 = vld [vmem:[#allocation2] sm:$0xff]
    %v40 = vld [vmem:[#allocation2 + $0x8] sm:$0xff]
    %v41 = vld [vmem:[#allocation2 + $0x10] sm:$0xff]
    %v42 = vld [vmem:[#allocation2 + $0x18] sm:$0xff]
    %v43 = vld [vmem:[#allocation2 + $0x20] sm:$0xff]
    %v44 = vld [vmem:[#allocation2 + $0x28] sm:$0xff]
    %v45 = vld [vmem:[#allocation2 + $0x30] sm:$0xff]
    %v46 = vld [vmem:[#allocation2 + $0x38] sm:$0xff]
    %v47 = vld [vmem:[%s2] sm:$0xff]
    %v48 = vld [vmem:[%s2 + $0x8] sm:$0xff]
    %v49 = vld [vmem:[%s2 + $0x10] sm:$0xff]
    %v50 = vld [vmem:[%s2 + $0x18] sm:$0xff]
    %59 = vrot.lane.b32.xlu0 %v31, 127
    %v60 = vpop.permute.xlu0 %59
    %61 = vrot.lane.b32.xlu0 %v32, 127
    %v62 = vpop.permute.xlu0 %61
    %63 = vrot.lane.b32.xlu0 %v33, 127
    %v64 = vpop.permute.xlu0 %63
    %65 = vrot.lane.b32.xlu0 %v34, 127
    %v66 = vpop.permute.xlu0 %65
    %67 = vrot.lane.b32.xlu0 %v35, 127
    %v68 = vpop.permute.xlu0 %67
    %69 = vrot.lane.b32.xlu0 %v36, 127
    %v70 = vpop.permute.xlu0 %69
    %71 = vrot.lane.b32.xlu0 %v37, 127
    %v72 = vpop.permute.xlu0 %71
    %73 = vrot.lane.b32.xlu0 %v38, 127
    %v74 = vpop.permute.xlu0 %73
    %vm75 = vcmask 1039360
    %v76 = vsel %vm75, %v60, %v62
    %v77 = vsel %vm75, %v62, %v64
    %v78 = vsel %vm75, %v64, %v66
    %v79 = vsel %vm75, %v68, %v70
    %v80 = vsel %vm75, %v70, %v72
    %v81 = vsel %vm75, %v72, %v74
    %v92 = vsel %vm75, %v66, %v60
    %v93 = vsel %vm75, %v74, %v68
    %94 = vrot.lane.b32.xlu0 %v31, 126
    %v95 = vpop.permute.xlu0 %94
    %96 = vrot.lane.b32.xlu0 %v32, 126
    %v97 = vpop.permute.xlu0 %96
    %98 = vrot.lane.b32.xlu0 %v33, 126
    %v99 = vpop.permute.xlu0 %98
    %100 = vrot.lane.b32.xlu0 %v34, 126
    %v101 = vpop.permute.xlu0 %100
    %102 = vrot.lane.b32.xlu0 %v35, 126
    %v103 = vpop.permute.xlu0 %102
    %104 = vrot.lane.b32.xlu0 %v36, 126
    %v105 = vpop.permute.xlu0 %104
    %106 = vrot.lane.b32.xlu0 %v37, 126
    %v107 = vpop.permute.xlu0 %106
    %108 = vrot.lane.b32.xlu0 %v38, 126
    %v109 = vpop.permute.xlu0 %108
    %vm110 = vcmask 1031168
    %v111 = vsel %vm110, %v95, %v97
    %v112 = vsel %vm110, %v97, %v99
    %v113 = vsel %vm110, %v99, %v101
    %v114 = vsel %vm110, %v103, %v105
    %v115 = vsel %vm110, %v105, %v107
    %v116 = vsel %vm110, %v107, %v109
    %v127 = vsel %vm110, %v101, %v95
    %v128 = vsel %vm110, %v109, %v103
    %129 = vrot.lane.b32.xlu0 %v31, 112
    %v130 = vpop.permute.xlu0 %129
    %131 = vrot.lane.b32.xlu0 %v32, 112
    %v132 = vpop.permute.xlu0 %131
    %133 = vrot.lane.b32.xlu0 %v33, 112
    %v134 = vpop.permute.xlu0 %133
    %135 = vrot.lane.b32.xlu0 %v34, 112
    %v136 = vpop.permute.xlu0 %135
    %137 = vrot.lane.b32.xlu0 %v35, 112
    %v138 = vpop.permute.xlu0 %137
    %139 = vrot.lane.b32.xlu0 %v36, 112
    %v140 = vpop.permute.xlu0 %139
    %141 = vrot.lane.b32.xlu0 %v37, 112
    %v142 = vpop.permute.xlu0 %141
    %143 = vrot.lane.b32.xlu0 %v38, 112
    %v144 = vpop.permute.xlu0 %143
    %vm145 = vcmask 916480
    %v146 = vsel %vm145, %v130, %v132
    %v147 = vsel %vm145, %v132, %v134
    %v148 = vsel %vm145, %v134, %v136
    %v149 = vsel %vm145, %v138, %v140
    %v150 = vsel %vm145, %v140, %v142
    %v151 = vsel %vm145, %v142, %v144
    %v162 = vsel %vm145, %v136, %v130
    %v163 = vsel %vm145, %v144, %v138
    %164 = vrot.lane.b32.xlu0 %v31, 111
    %v165 = vpop.permute.xlu0 %164
    %166 = vrot.lane.b32.xlu0 %v32, 111
    %v167 = vpop.permute.xlu0 %166
    %168 = vrot.lane.b32.xlu0 %v33, 111
    %v169 = vpop.permute.xlu0 %168
    %170 = vrot.lane.b32.xlu0 %v34, 111
    %v171 = vpop.permute.xlu0 %170
    %172 = vrot.lane.b32.xlu0 %v35, 111
    %v173 = vpop.permute.xlu0 %172
    %174 = vrot.lane.b32.xlu0 %v36, 111
    %v175 = vpop.permute.xlu0 %174
    %176 = vrot.lane.b32.xlu0 %v37, 111
    %v177 = vpop.permute.xlu0 %176
    %178 = vrot.lane.b32.xlu0 %v38, 111
    %v179 = vpop.permute.xlu0 %178
    %vm180 = vcmask 908288
    %v181 = vsel %vm180, %v165, %v167
    %v182 = vsel %vm180, %v167, %v169
    %v183 = vsel %vm180, %v169, %v171
    %v184 = vsel %vm180, %v173, %v175
    %v185 = vsel %vm180, %v175, %v177
    %v186 = vsel %vm180, %v177, %v179
    %v197 = vsel %vm180, %v171, %v165
    %v198 = vsel %vm180, %v179, %v173
    %199 = vrot.lane.b32.xlu0 %v31, 110
    %v200 = vpop.permute.xlu0 %199
    %201 = vrot.lane.b32.xlu0 %v32, 110
    %v202 = vpop.permute.xlu0 %201
    %203 = vrot.lane.b32.xlu0 %v33, 110
    %v204 = vpop.permute.xlu0 %203
    %205 = vrot.lane.b32.xlu0 %v34, 110
    %v206 = vpop.permute.xlu0 %205
    %207 = vrot.lane.b32.xlu0 %v35, 110
    %v208 = vpop.permute.xlu0 %207
    %209 = vrot.lane.b32.xlu0 %v36, 110
    %v210 = vpop.permute.xlu0 %209
    %211 = vrot.lane.b32.xlu0 %v37, 110
    %v212 = vpop.permute.xlu0 %211
    %213 = vrot.lane.b32.xlu0 %v38, 110
    %v214 = vpop.permute.xlu0 %213
    %vm215 = vcmask 900096
    %v216 = vsel %vm215, %v200, %v202
    %v217 = vsel %vm215, %v202, %v204
    %v218 = vsel %vm215, %v204, %v206
    %v219 = vsel %vm215, %v208, %v210
    %v220 = vsel %vm215, %v210, %v212
    %v221 = vsel %vm215, %v212, %v214
    %v232 = vsel %vm215, %v206, %v200
    %v233 = vsel %vm215, %v214, %v208
    %234 = vrot.lane.b32.xlu0 %v31, 96
    %v235 = vpop.permute.xlu0 %234
    %236 = vrot.lane.b32.xlu0 %v32, 96
    %v237 = vpop.permute.xlu0 %236
    %238 = vrot.lane.b32.xlu0 %v33, 96
    %v239 = vpop.permute.xlu0 %238
    %240 = vrot.lane.b32.xlu0 %v34, 96
    %v241 = vpop.permute.xlu0 %240
    %242 = vrot.lane.b32.xlu0 %v35, 96
    %v243 = vpop.permute.xlu0 %242
    %244 = vrot.lane.b32.xlu0 %v36, 96
    %v245 = vpop.permute.xlu0 %244
    %246 = vrot.lane.b32.xlu0 %v37, 96
    %v247 = vpop.permute.xlu0 %246
    %248 = vrot.lane.b32.xlu0 %v38, 96
    %v249 = vpop.permute.xlu0 %248
    %vm250 = vcmask 785408
    %v251 = vsel %vm250, %v235, %v237
    %v252 = vsel %vm250, %v237, %v239
    %v253 = vsel %vm250, %v239, %v241
    %v254 = vsel %vm250, %v243, %v245
    %v255 = vsel %vm250, %v245, %v247
    %v256 = vsel %vm250, %v247, %v249
    %v267 = vsel %vm250, %v241, %v235
    %v268 = vsel %vm250, %v249, %v243
    %269 = vrot.lane.b32.xlu0 %v31, 95
    %v270 = vpop.permute.xlu0 %269
    %271 = vrot.lane.b32.xlu0 %v32, 95
    %v272 = vpop.permute.xlu0 %271
    %273 = vrot.lane.b32.xlu0 %v33, 95
    %v274 = vpop.permute.xlu0 %273
    %275 = vrot.lane.b32.xlu0 %v34, 95
    %v276 = vpop.permute.xlu0 %275
    %277 = vrot.lane.b32.xlu0 %v35, 95
    %v278 = vpop.permute.xlu0 %277
    %279 = vrot.lane.b32.xlu0 %v36, 95
    %v280 = vpop.permute.xlu0 %279
    %281 = vrot.lane.b32.xlu0 %v37, 95
    %v282 = vpop.permute.xlu0 %281
    %283 = vrot.lane.b32.xlu0 %v38, 95
    %v284 = vpop.permute.xlu0 %283
    %vm285 = vcmask 777216
    %v286 = vsel %vm285, %v270, %v272
    %v287 = vsel %vm285, %v272, %v274
    %v288 = vsel %vm285, %v274, %v276
    %v289 = vsel %vm285, %v278, %v280
    %v290 = vsel %vm285, %v280, %v282
    %v291 = vsel %vm285, %v282, %v284
    %v302 = vsel %vm285, %v276, %v270
    %v303 = vsel %vm285, %v284, %v278
    %304 = vrot.lane.b32.xlu0 %v31, 94
    %v305 = vpop.permute.xlu0 %304
    %306 = vrot.lane.b32.xlu0 %v32, 94
    %v307 = vpop.permute.xlu0 %306
    %308 = vrot.lane.b32.xlu0 %v33, 94
    %v309 = vpop.permute.xlu0 %308
    %310 = vrot.lane.b32.xlu0 %v34, 94
    %v311 = vpop.permute.xlu0 %310
    %312 = vrot.lane.b32.xlu0 %v35, 94
    %v313 = vpop.permute.xlu0 %312
    %314 = vrot.lane.b32.xlu0 %v36, 94
    %v315 = vpop.permute.xlu0 %314
    %316 = vrot.lane.b32.xlu0 %v37, 94
    %v317 = vpop.permute.xlu0 %316
    %318 = vrot.lane.b32.xlu0 %v38, 94
    %v319 = vpop.permute.xlu0 %318
    %vm320 = vcmask 769024
    %v321 = vsel %vm320, %v305, %v307
    %v322 = vsel %vm320, %v307, %v309
    %v323 = vsel %vm320, %v309, %v311
    %v324 = vsel %vm320, %v313, %v315
    %v325 = vsel %vm320, %v315, %v317
    %v326 = vsel %vm320, %v317, %v319
    %v337 = vsel %vm320, %v311, %v305
    %v338 = vsel %vm320, %v319, %v313
    %340 = vset.pattern.permute.xlu0 0
    %341 = vperm.xlu0 %340, %v47
    %v342 = vpop.permute.xlu0 %341
    %345 = vset.pattern.permute.xlu0 0
    %346 = vperm.xlu0 %345, %v48
    %v347 = vpop.permute.xlu0 %346
    %350 = vset.pattern.permute.xlu0 0
    %351 = vperm.xlu0 %350, %v49
    %v352 = vpop.permute.xlu0 %351
    %355 = vset.pattern.permute.xlu0 0
    %356 = vperm.xlu0 %355, %v50
    %v357 = vpop.permute.xlu0 %356
    %vm359 = vcmask 130048
    %v361 = vsel %vm359, %v40, 0
    %v364 = vsel %vm359, %v42, 0
    %v367 = vsel %vm359, %v44, 0
    %v370 = vsel %vm359, %v46, 0
    %372 = vmatpush.msra.mxu0 %v289
    %373 = vmatpush.msra.mxu0 %v286
    %374 = vmatpush.msra.mxu0 %v254
    %375 = vmatpush.msra.mxu0 %v251
    %376 = vmatpush.msra.mxu0 %v219
    %377 = vmatpush.msra.mxu0 %v216
    %378 = vmatpush.msra.mxu0 %v184
    %379 = vmatpush.msra.mxu0 %v181
    %380 = vmatpush.msra.mxu0 %v149
    %381 = vmatpush.msra.mxu0 %v146
    %382 = vmatpush.msra.mxu0 %v114
    %383 = vmatpush.msra.mxu0 %v111
    %384 = vmatpush.msra.mxu0 %v79
    %385 = vmatpush.msra.mxu0 %v76
    %386 = vmatpush.msra.mxu0 %v35
    %387 = vmatpush.msra.mxu0 %v31
    %388 = vmatmul.f32.gmra.mxu0 %v39
    %v389 = vpop.f32.mrf.mxu0
    %v390 = vadd.f32 %v342, %v389
    %391 = vmatmul.f32.gmra.mxu0 %v41
    %v392 = vpop.f32.mrf.mxu0
    %v393 = vadd.f32 %v347, %v392
    %394 = vmatmul.f32.gmra.mxu0 %v43
    %v395 = vpop.f32.mrf.mxu0
    %v396 = vadd.f32 %v352, %v395
    %397 = vmatmul.f32.gmra.mxu0 %v45
    %v398 = vpop.f32.mrf.mxu0
    %v399 = vadd.f32 %v357, %v398
    %400 = vdwg.mxu0
    %401 = vmatpush.msra.mxu0 0.0
    %402 = vmatpush.msra.mxu0 0.0
    %403 = vmatpush.msra.mxu0 0.0
    %404 = vmatpush.msra.mxu0 0.0
    %405 = vmatpush.msra.mxu0 0.0
    %406 = vmatpush.msra.mxu0 0.0
    %407 = vmatpush.msra.mxu0 0.0
    %408 = vmatpush.msra.mxu0 0.0
    %409 = vmatpush.msra.mxu0 0.0
    %410 = vmatpush.msra.mxu0 0.0
    %411 = vmatpush.msra.mxu0 0.0
    %412 = vmatpush.msra.mxu0 0.0
    %413 = vmatpush.msra.mxu0 0.0
    %414 = vmatpush.msra.mxu0 0.0
    %415 = vmatpush.msra.mxu0 %v324
    %416 = vmatpush.msra.mxu0 %v321
    %417 = vmatmul.f32.gmra.mxu0 %v361
    %v418 = vpop.f32.mrf.mxu0
    %v419 = vadd.f32 %v390, %v418
    %420 = vmatmul.f32.gmra.mxu0 %v364
    %v421 = vpop.f32.mrf.mxu0
    %v422 = vadd.f32 %v393, %v421
    %423 = vmatmul.f32.gmra.mxu0 %v367
    %v424 = vpop.f32.mrf.mxu0
    %v425 = vadd.f32 %v396, %v424
    %426 = vmatmul.f32.gmra.mxu0 %v370
    %v427 = vpop.f32.mrf.mxu0
    %v428 = vadd.f32 %v399, %v427
    %429 = vdwg.mxu0
    %430 = vmatpush.msra.mxu0 %v290
    %431 = vmatpush.msra.mxu0 %v287
    %432 = vmatpush.msra.mxu0 %v255
    %433 = vmatpush.msra.mxu0 %v252
    %434 = vmatpush.msra.mxu0 %v220
    %435 = vmatpush.msra.mxu0 %v217
    %436 = vmatpush.msra.mxu0 %v185
    %437 = vmatpush.msra.mxu0 %v182
    %438 = vmatpush.msra.mxu0 %v150
    %439 = vmatpush.msra.mxu0 %v147
    %440 = vmatpush.msra.mxu0 %v115
    %441 = vmatpush.msra.mxu0 %v112
    %442 = vmatpush.msra.mxu0 %v80
    %443 = vmatpush.msra.mxu0 %v77
    %444 = vmatpush.msra.mxu0 %v36
    %445 = vmatpush.msra.mxu0 %v32
    %446 = vmatmul.f32.gmra.mxu0 %v39
    %v447 = vpop.f32.mrf.mxu0
    %v448 = vadd.f32 %v342, %v447
    %449 = vmatmul.f32.gmra.mxu0 %v41
    %v450 = vpop.f32.mrf.mxu0
    %v451 = vadd.f32 %v347, %v450
    %452 = vmatmul.f32.gmra.mxu0 %v43
    %v453 = vpop.f32.mrf.mxu0
    %v454 = vadd.f32 %v352, %v453
    %455 = vmatmul.f32.gmra.mxu0 %v45
    %v456 = vpop.f32.mrf.mxu0
    %v457 = vadd.f32 %v357, %v456
    %458 = vdwg.mxu0
    %459 = vmatpush.msra.mxu0 0.0
    %460 = vmatpush.msra.mxu0 0.0
    %461 = vmatpush.msra.mxu0 0.0
    %462 = vmatpush.msra.mxu0 0.0
    %463 = vmatpush.msra.mxu0 0.0
    %464 = vmatpush.msra.mxu0 0.0
    %465 = vmatpush.msra.mxu0 0.0
    %466 = vmatpush.msra.mxu0 0.0
    %467 = vmatpush.msra.mxu0 0.0
    %468 = vmatpush.msra.mxu0 0.0
    %469 = vmatpush.msra.mxu0 0.0
    %470 = vmatpush.msra.mxu0 0.0
    %471 = vmatpush.msra.mxu0 0.0
    %472 = vmatpush.msra.mxu0 0.0
    %473 = vmatpush.msra.mxu0 %v325
    %474 = vmatpush.msra.mxu0 %v322
    %475 = vmatmul.f32.gmra.mxu0 %v361
    %v476 = vpop.f32.mrf.mxu0
    %v477 = vadd.f32 %v448, %v476
    %478 = vmatmul.f32.gmra.mxu0 %v364
    %v479 = vpop.f32.mrf.mxu0
    %v480 = vadd.f32 %v451, %v479
    %481 = vmatmul.f32.gmra.mxu0 %v367
    %v482 = vpop.f32.mrf.mxu0
    %v483 = vadd.f32 %v454, %v482
    %484 = vmatmul.f32.gmra.mxu0 %v370
    %v485 = vpop.f32.mrf.mxu0
    %v486 = vadd.f32 %v457, %v485
    %487 = vdwg.mxu0
    %488 = vmatpush.msra.mxu0 %v291
    %489 = vmatpush.msra.mxu0 %v288
    %490 = vmatpush.msra.mxu0 %v256
    %491 = vmatpush.msra.mxu0 %v253
    %492 = vmatpush.msra.mxu0 %v221
    %493 = vmatpush.msra.mxu0 %v218
    %494 = vmatpush.msra.mxu0 %v186
    %495 = vmatpush.msra.mxu0 %v183
    %496 = vmatpush.msra.mxu0 %v151
    %497 = vmatpush.msra.mxu0 %v148
    %498 = vmatpush.msra.mxu0 %v116
    %499 = vmatpush.msra.mxu0 %v113
    %500 = vmatpush.msra.mxu0 %v81
    %501 = vmatpush.msra.mxu0 %v78
    %502 = vmatpush.msra.mxu0 %v37
    %503 = vmatpush.msra.mxu0 %v33
    %504 = vmatmul.f32.gmra.mxu0 %v39
    %v505 = vpop.f32.mrf.mxu0
    %v506 = vadd.f32 %v342, %v505
    %507 = vmatmul.f32.gmra.mxu0 %v41
    %v508 = vpop.f32.mrf.mxu0
    %v509 = vadd.f32 %v347, %v508
    %510 = vmatmul.f32.gmra.mxu0 %v43
    %v511 = vpop.f32.mrf.mxu0
    %v512 = vadd.f32 %v352, %v511
    %513 = vmatmul.f32.gmra.mxu0 %v45
    %v514 = vpop.f32.mrf.mxu0
    %v515 = vadd.f32 %v357, %v514
    %516 = vdwg.mxu0
    %517 = vmatpush.msra.mxu0 0.0
    %518 = vmatpush.msra.mxu0 0.0
    %519 = vmatpush.msra.mxu0 0.0
    %520 = vmatpush.msra.mxu0 0.0
    %521 = vmatpush.msra.mxu0 0.0
    %522 = vmatpush.msra.mxu0 0.0
    %523 = vmatpush.msra.mxu0 0.0
    %524 = vmatpush.msra.mxu0 0.0
    %525 = vmatpush.msra.mxu0 0.0
    %526 = vmatpush.msra.mxu0 0.0
    %527 = vmatpush.msra.mxu0 0.0
    %528 = vmatpush.msra.mxu0 0.0
    %529 = vmatpush.msra.mxu0 0.0
    %530 = vmatpush.msra.mxu0 0.0
    %531 = vmatpush.msra.mxu0 %v326
    %532 = vmatpush.msra.mxu0 %v323
    %533 = vmatmul.f32.gmra.mxu0 %v361
    %v534 = vpop.f32.mrf.mxu0
    %v535 = vadd.f32 %v506, %v534
    %536 = vmatmul.f32.gmra.mxu0 %v364
    %v537 = vpop.f32.mrf.mxu0
    %v538 = vadd.f32 %v509, %v537
    %539 = vmatmul.f32.gmra.mxu0 %v367
    %v540 = vpop.f32.mrf.mxu0
    %v541 = vadd.f32 %v512, %v540
    %542 = vmatmul.f32.gmra.mxu0 %v370
    %v543 = vpop.f32.mrf.mxu0
    %v544 = vadd.f32 %v515, %v543
    %545 = vdwg.mxu0
    %546 = vmatpush.msra.mxu0 %v303
    %547 = vmatpush.msra.mxu0 %v302
    %548 = vmatpush.msra.mxu0 %v268
    %549 = vmatpush.msra.mxu0 %v267
    %550 = vmatpush.msra.mxu0 %v233
    %551 = vmatpush.msra.mxu0 %v232
    %552 = vmatpush.msra.mxu0 %v198
    %553 = vmatpush.msra.mxu0 %v197
    %554 = vmatpush.msra.mxu0 %v163
    %555 = vmatpush.msra.mxu0 %v162
    %556 = vmatpush.msra.mxu0 %v128
    %557 = vmatpush.msra.mxu0 %v127
    %558 = vmatpush.msra.mxu0 %v93
    %559 = vmatpush.msra.mxu0 %v92
    %560 = vmatpush.msra.mxu0 %v38
    %561 = vmatpush.msra.mxu0 %v34
    %562 = vmatmul.f32.gmra.mxu0 %v39
    %v563 = vpop.f32.mrf.mxu0
    %v564 = vadd.f32 %v342, %v563
    %565 = vmatmul.f32.gmra.mxu0 %v41
    %v566 = vpop.f32.mrf.mxu0
    %v567 = vadd.f32 %v347, %v566
    %568 = vmatmul.f32.gmra.mxu0 %v43
    %v569 = vpop.f32.mrf.mxu0
    %v570 = vadd.f32 %v352, %v569
    %571 = vmatmul.f32.gmra.mxu0 %v45
    %v572 = vpop.f32.mrf.mxu0
    %v573 = vadd.f32 %v357, %v572
    %574 = vdwg.mxu0
    %575 = vmatpush.msra.mxu0 0.0
    %576 = vmatpush.msra.mxu0 0.0
    %577 = vmatpush.msra.mxu0 0.0
    %578 = vmatpush.msra.mxu0 0.0
    %579 = vmatpush.msra.mxu0 0.0
    %580 = vmatpush.msra.mxu0 0.0
    %581 = vmatpush.msra.mxu0 0.0
    %582 = vmatpush.msra.mxu0 0.0
    %583 = vmatpush.msra.mxu0 0.0
    %584 = vmatpush.msra.mxu0 0.0
    %585 = vmatpush.msra.mxu0 0.0
    %586 = vmatpush.msra.mxu0 0.0
    %587 = vmatpush.msra.mxu0 0.0
    %588 = vmatpush.msra.mxu0 0.0
    %589 = vmatpush.msra.mxu0 %v338
    %590 = vmatpush.msra.mxu0 %v337
    %591 = vmatmul.f32.gmra.mxu0 %v361
    %v592 = vpop.f32.mrf.mxu0
    %v593 = vadd.f32 %v564, %v592
    %594 = vmatmul.f32.gmra.mxu0 %v364
    %v595 = vpop.f32.mrf.mxu0
    %v596 = vadd.f32 %v567, %v595
    %597 = vmatmul.f32.gmra.mxu0 %v367
    %v598 = vpop.f32.mrf.mxu0
    %v599 = vadd.f32 %v570, %v598
    %600 = vmatmul.f32.gmra.mxu0 %v370
    %v601 = vpop.f32.mrf.mxu0
    %v602 = vadd.f32 %v573, %v601
    %603 = vdwg.mxu0
    %v604 = vmax.f32 %v419, 0.0
    %v605 = vmax.f32 %v477, 0.0
    %v606 = vmax.f32 %v535, 0.0
    %v607 = vmax.f32 %v593, 0.0
    %v608 = vmax.f32 %v422, 0.0
    %v609 = vmax.f32 %v480, 0.0
    %v610 = vmax.f32 %v538, 0.0
    %v611 = vmax.f32 %v596, 0.0
    %v612 = vadd.f32 %v604, %v425
    %v613 = vadd.f32 %v605, %v483
    %v614 = vadd.f32 %v606, %v541
    %v615 = vadd.f32 %v607, %v599
    %v616 = vadd.f32 %v608, %v428
    %v617 = vadd.f32 %v609, %v486
    %v618 = vadd.f32 %v610, %v544
    %v619 = vadd.f32 %v611, %v602
    %s620 = scalar_lea.vmem [#allocation2], 64
    %v621 = vld [vmem:[%s620] sm:$0xff]
    %v622 = vld [vmem:[%s620 + $0x8] sm:$0xff]
    %v623 = vld [vmem:[%s620 + $0x10] sm:$0xff]
    %v624 = vld [vmem:[%s620 + $0x18] sm:$0xff]
    %v625 = vld [vmem:[%s620 + $0x20] sm:$0xff]
    %v626 = vld [vmem:[%s620 + $0x28] sm:$0xff]
    %v627 = vld [vmem:[%s620 + $0x30] sm:$0xff]
    %v628 = vld [vmem:[%s620 + $0x38] sm:$0xff]
    %s629 = scalar_lea.vmem %s2, 32
    %v630 = vld [vmem:[%s629] sm:$0xff]
    %v631 = vld [vmem:[%s629 + $0x8] sm:$0xff]
    %v632 = vld [vmem:[%s629 + $0x10] sm:$0xff]
    %v633 = vld [vmem:[%s629 + $0x18] sm:$0xff]
    %642 = vrot.lane.b32.xlu0 %v612, 127
    %v643 = vpop.permute.xlu0 %642
    %644 = vrot.lane.b32.xlu0 %v613, 127
    %v645 = vpop.permute.xlu0 %644
    %646 = vrot.lane.b32.xlu0 %v614, 127
    %v647 = vpop.permute.xlu0 %646
    %648 = vrot.lane.b32.xlu0 %v615, 127
    %v649 = vpop.permute.xlu0 %648
    %650 = vrot.lane.b32.xlu0 %v616, 127
    %v651 = vpop.permute.xlu0 %650
    %652 = vrot.lane.b32.xlu0 %v617, 127
    %v653 = vpop.permute.xlu0 %652
    %654 = vrot.lane.b32.xlu0 %v618, 127
    %v655 = vpop.permute.xlu0 %654
    %656 = vrot.lane.b32.xlu0 %v619, 127
    %v657 = vpop.permute.xlu0 %656
    %v658 = vsel %vm75, %v643, %v645
    %v659 = vsel %vm75, %v645, %v647
    %v660 = vsel %vm75, %v647, %v649
    %v661 = vsel %vm75, %v651, %v653
    %v662 = vsel %vm75, %v653, %v655
    %v663 = vsel %vm75, %v655, %v657
    %v674 = vsel %vm75, %v649, %v643
    %v675 = vsel %vm75, %v657, %v651
    %676 = vrot.lane.b32.xlu0 %v612, 126
    %v677 = vpop.permute.xlu0 %676
    %678 = vrot.lane.b32.xlu0 %v613, 126
    %v679 = vpop.permute.xlu0 %678
    %680 = vrot.lane.b32.xlu0 %v614, 126
    %v681 = vpop.permute.xlu0 %680
    %682 = vrot.lane.b32.xlu0 %v615, 126
    %v683 = vpop.permute.xlu0 %682
    %684 = vrot.lane.b32.xlu0 %v616, 126
    %v685 = vpop.permute.xlu0 %684
    %686 = vrot.lane.b32.xlu0 %v617, 126
    %v687 = vpop.permute.xlu0 %686
    %688 = vrot.lane.b32.xlu0 %v618, 126
    %v689 = vpop.permute.xlu0 %688
    %690 = vrot.lane.b32.xlu0 %v619, 126
    %v691 = vpop.permute.xlu0 %690
    %v692 = vsel %vm110, %v677, %v679
    %v693 = vsel %vm110, %v679, %v681
    %v694 = vsel %vm110, %v681, %v683
    %v695 = vsel %vm110, %v685, %v687
    %v696 = vsel %vm110, %v687, %v689
    %v697 = vsel %vm110, %v689, %v691
    %v708 = vsel %vm110, %v683, %v677
    %v709 = vsel %vm110, %v691, %v685
    %710 = vrot.lane.b32.xlu0 %v612, 112
    %v711 = vpop.permute.xlu0 %710
    %712 = vrot.lane.b32.xlu0 %v613, 112
    %v713 = vpop.permute.xlu0 %712
    %714 = vrot.lane.b32.xlu0 %v614, 112
    %v715 = vpop.permute.xlu0 %714
    %716 = vrot.lane.b32.xlu0 %v615, 112
    %v717 = vpop.permute.xlu0 %716
    %718 = vrot.lane.b32.xlu0 %v616, 112
    %v719 = vpop.permute.xlu0 %718
    %720 = vrot.lane.b32.xlu0 %v617, 112
    %v721 = vpop.permute.xlu0 %720
    %722 = vrot.lane.b32.xlu0 %v618, 112
    %v723 = vpop.permute.xlu0 %722
    %724 = vrot.lane.b32.xlu0 %v619, 112
    %v725 = vpop.permute.xlu0 %724
    %v726 = vsel %vm145, %v711, %v713
    %v727 = vsel %vm145, %v713, %v715
    %v728 = vsel %vm145, %v715, %v717
    %v729 = vsel %vm145, %v719, %v721
    %v730 = vsel %vm145, %v721, %v723
    %v731 = vsel %vm145, %v723, %v725
    %v742 = vsel %vm145, %v717, %v711
    %v743 = vsel %vm145, %v725, %v719
    %744 = vrot.lane.b32.xlu0 %v612, 111
    %v745 = vpop.permute.xlu0 %744
    %746 = vrot.lane.b32.xlu0 %v613, 111
    %v747 = vpop.permute.xlu0 %746
    %748 = vrot.lane.b32.xlu0 %v614, 111
    %v749 = vpop.permute.xlu0 %748
    %750 = vrot.lane.b32.xlu0 %v615, 111
    %v751 = vpop.permute.xlu0 %750
    %752 = vrot.lane.b32.xlu0 %v616, 111
    %v753 = vpop.permute.xlu0 %752
    %754 = vrot.lane.b32.xlu0 %v617, 111
    %v755 = vpop.permute.xlu0 %754
    %756 = vrot.lane.b32.xlu0 %v618, 111
    %v757 = vpop.permute.xlu0 %756
    %758 = vrot.lane.b32.xlu0 %v619, 111
    %v759 = vpop.permute.xlu0 %758
    %v760 = vsel %vm180, %v745, %v747
    %v761 = vsel %vm180, %v747, %v749
    %v762 = vsel %vm180, %v749, %v751
    %v763 = vsel %vm180, %v753, %v755
    %v764 = vsel %vm180, %v755, %v757
    %v765 = vsel %vm180, %v757, %v759
    %v776 = vsel %vm180, %v751, %v745
    %v777 = vsel %vm180, %v759, %v753
    %778 = vrot.lane.b32.xlu0 %v612, 110
    %v779 = vpop.permute.xlu0 %778
    %780 = vrot.lane.b32.xlu0 %v613, 110
    %v781 = vpop.permute.xlu0 %780
    %782 = vrot.lane.b32.xlu0 %v614, 110
    %v783 = vpop.permute.xlu0 %782
    %784 = vrot.lane.b32.xlu0 %v615, 110
    %v785 = vpop.permute.xlu0 %784
    %786 = vrot.lane.b32.xlu0 %v616, 110
    %v787 = vpop.permute.xlu0 %786
    %788 = vrot.lane.b32.xlu0 %v617, 110
    %v789 = vpop.permute.xlu0 %788
    %790 = vrot.lane.b32.xlu0 %v618, 110
    %v791 = vpop.permute.xlu0 %790
    %792 = vrot.lane.b32.xlu0 %v619, 110
    %v793 = vpop.permute.xlu0 %792
    %v794 = vsel %vm215, %v779, %v781
    %v795 = vsel %vm215, %v781, %v783
    %v796 = vsel %vm215, %v783, %v785
    %v797 = vsel %vm215, %v787, %v789
    %v798 = vsel %vm215, %v789, %v791
    %v799 = vsel %vm215, %v791, %v793
    %v810 = vsel %vm215, %v785, %v779
    %v811 = vsel %vm215, %v793, %v787
    %812 = vrot.lane.b32.xlu0 %v612, 96
    %v813 = vpop.permute.xlu0 %812
    %814 = vrot.lane.b32.xlu0 %v613, 96
    %v815 = vpop.permute.xlu0 %814
    %816 = vrot.lane.b32.xlu0 %v614, 96
    %v817 = vpop.permute.xlu0 %816
    %818 = vrot.lane.b32.xlu0 %v615, 96
    %v819 = vpop.permute.xlu0 %818
    %820 = vrot.lane.b32.xlu0 %v616, 96
    %v821 = vpop.permute.xlu0 %820
    %822 = vrot.lane.b32.xlu0 %v617, 96
    %v823 = vpop.permute.xlu0 %822
    %824 = vrot.lane.b32.xlu0 %v618, 96
    %v825 = vpop.permute.xlu0 %824
    %826 = vrot.lane.b32.xlu0 %v619, 96
    %v827 = vpop.permute.xlu0 %826
    %v828 = vsel %vm250, %v813, %v815
    %v829 = vsel %vm250, %v815, %v817
    %v830 = vsel %vm250, %v817, %v819
    %v831 = vsel %vm250, %v821, %v823
    %v832 = vsel %vm250, %v823, %v825
    %v833 = vsel %vm250, %v825, %v827
    %v844 = vsel %vm250, %v819, %v813
    %v845 = vsel %vm250, %v827, %v821
    %846 = vrot.lane.b32.xlu0 %v612, 95
    %v847 = vpop.permute.xlu0 %846
    %848 = vrot.lane.b32.xlu0 %v613, 95
    %v849 = vpop.permute.xlu0 %848
    %850 = vrot.lane.b32.xlu0 %v614, 95
    %v851 = vpop.permute.xlu0 %850
    %852 = vrot.lane.b32.xlu0 %v615, 95
    %v853 = vpop.permute.xlu0 %852
    %854 = vrot.lane.b32.xlu0 %v616, 95
    %v855 = vpop.permute.xlu0 %854
    %856 = vrot.lane.b32.xlu0 %v617, 95
    %v857 = vpop.permute.xlu0 %856
    %858 = vrot.lane.b32.xlu0 %v618, 95
    %v859 = vpop.permute.xlu0 %858
    %860 = vrot.lane.b32.xlu0 %v619, 95
    %v861 = vpop.permute.xlu0 %860
    %v862 = vsel %vm285, %v847, %v849
    %v863 = vsel %vm285, %v849, %v851
    %v864 = vsel %vm285, %v851, %v853
    %v865 = vsel %vm285, %v855, %v857
    %v866 = vsel %vm285, %v857, %v859
    %v867 = vsel %vm285, %v859, %v861
    %v878 = vsel %vm285, %v853, %v847
    %v879 = vsel %vm285, %v861, %v855
    %880 = vrot.lane.b32.xlu0 %v612, 94
    %v881 = vpop.permute.xlu0 %880
    %882 = vrot.lane.b32.xlu0 %v613, 94
    %v883 = vpop.permute.xlu0 %882
    %884 = vrot.lane.b32.xlu0 %v614, 94
    %v885 = vpop.permute.xlu0 %884
    %886 = vrot.lane.b32.xlu0 %v615, 94
    %v887 = vpop.permute.xlu0 %886
    %888 = vrot.lane.b32.xlu0 %v616, 94
    %v889 = vpop.permute.xlu0 %888
    %890 = vrot.lane.b32.xlu0 %v617, 94
    %v891 = vpop.permute.xlu0 %890
    %892 = vrot.lane.b32.xlu0 %v618, 94
    %v893 = vpop.permute.xlu0 %892
    %894 = vrot.lane.b32.xlu0 %v619, 94
    %v895 = vpop.permute.xlu0 %894
    %v896 = vsel %vm320, %v881, %v883
    %v897 = vsel %vm320, %v883, %v885
    %v898 = vsel %vm320, %v885, %v887
    %v899 = vsel %vm320, %v889, %v891
    %v900 = vsel %vm320, %v891, %v893
    %v901 = vsel %vm320, %v893, %v895
    %v912 = vsel %vm320, %v887, %v881
    %v913 = vsel %vm320, %v895, %v889
    %915 = vset.pattern.permute.xlu0 0
    %916 = vperm.xlu0 %915, %v630
    %v917 = vpop.permute.xlu0 %916
    %920 = vset.pattern.permute.xlu0 0
    %921 = vperm.xlu0 %920, %v631
    %v922 = vpop.permute.xlu0 %921
    %925 = vset.pattern.permute.xlu0 0
    %926 = vperm.xlu0 %925, %v632
    %v927 = vpop.permute.xlu0 %926
    %930 = vset.pattern.permute.xlu0 0
    %931 = vperm.xlu0 %930, %v633
    %v932 = vpop.permute.xlu0 %931
    %v935 = vsel %vm359, %v622, 0
    %v938 = vsel %vm359, %v624, 0
    %v941 = vsel %vm359, %v626, 0
    %v944 = vsel %vm359, %v628, 0
    %946 = vmatpush.msra.mxu0 %v865
    %947 = vmatpush.msra.mxu0 %v862
    %948 = vmatpush.msra.mxu0 %v831
    %949 = vmatpush.msra.mxu0 %v828
    %950 = vmatpush.msra.mxu0 %v797
    %951 = vmatpush.msra.mxu0 %v794
    %952 = vmatpush.msra.mxu0 %v763
    %953 = vmatpush.msra.mxu0 %v760
    %954 = vmatpush.msra.mxu0 %v729
    %955 = vmatpush.msra.mxu0 %v726
    %956 = vmatpush.msra.mxu0 %v695
    %957 = vmatpush.msra.mxu0 %v692
    %958 = vmatpush.msra.mxu0 %v661
    %959 = vmatpush.msra.mxu0 %v658
    %960 = vmatpush.msra.mxu0 %v616
    %961 = vmatpush.msra.mxu0 %v612
    %962 = vmatmul.f32.gmra.mxu0 %v621
    %v963 = vpop.f32.mrf.mxu0
    %v964 = vadd.f32 %v917, %v963
    %965 = vmatmul.f32.gmra.mxu0 %v623
    %v966 = vpop.f32.mrf.mxu0
    %v967 = vadd.f32 %v922, %v966
    %968 = vmatmul.f32.gmra.mxu0 %v625
    %v969 = vpop.f32.mrf.mxu0
    %v970 = vadd.f32 %v927, %v969
    %971 = vmatmul.f32.gmra.mxu0 %v627
    %v972 = vpop.f32.mrf.mxu0
    %v973 = vadd.f32 %v932, %v972
    %974 = vdwg.mxu0
    %975 = vmatpush.msra.mxu0 0.0
    %976 = vmatpush.msra.mxu0 0.0
    %977 = vmatpush.msra.mxu0 0.0
    %978 = vmatpush.msra.mxu0 0.0
    %979 = vmatpush.msra.mxu0 0.0
    %980 = vmatpush.msra.mxu0 0.0
    %981 = vmatpush.msra.mxu0 0.0
    %982 = vmatpush.msra.mxu0 0.0
    %983 = vmatpush.msra.mxu0 0.0
    %984 = vmatpush.msra.mxu0 0.0
    %985 = vmatpush.msra.mxu0 0.0
    %986 = vmatpush.msra.mxu0 0.0
    %987 = vmatpush.msra.mxu0 0.0
    %988 = vmatpush.msra.mxu0 0.0
    %989 = vmatpush.msra.mxu0 %v899
    %990 = vmatpush.msra.mxu0 %v896
    %991 = vmatmul.f32.gmra.mxu0 %v935
    %v992 = vpop.f32.mrf.mxu0
    %v993 = vadd.f32 %v964, %v992
    %994 = vmatmul.f32.gmra.mxu0 %v938
    %v995 = vpop.f32.mrf.mxu0
    %v996 = vadd.f32 %v967, %v995
    %997 = vmatmul.f32.gmra.mxu0 %v941
    %v998 = vpop.f32.mrf.mxu0
    %v999 = vadd.f32 %v970, %v998
    %1000 = vmatmul.f32.gmra.mxu0 %v944
    %v1001 = vpop.f32.mrf.mxu0
    %v1002 = vadd.f32 %v973, %v1001
    %1003 = vdwg.mxu0
    %1004 = vmatpush.msra.mxu0 %v866
    %1005 = vmatpush.msra.mxu0 %v863
    %1006 = vmatpush.msra.mxu0 %v832
    %1007 = vmatpush.msra.mxu0 %v829
    %1008 = vmatpush.msra.mxu0 %v798
    %1009 = vmatpush.msra.mxu0 %v795
    %1010 = vmatpush.msra.mxu0 %v764
    %1011 = vmatpush.msra.mxu0 %v761
    %1012 = vmatpush.msra.mxu0 %v730
    %1013 = vmatpush.msra.mxu0 %v727
    %1014 = vmatpush.msra.mxu0 %v696
    %1015 = vmatpush.msra.mxu0 %v693
    %1016 = vmatpush.msra.mxu0 %v662
    %1017 = vmatpush.msra.mxu0 %v659
    %1018 = vmatpush.msra.mxu0 %v617
    %1019 = vmatpush.msra.mxu0 %v613
    %1020 = vmatmul.f32.gmra.mxu0 %v621
    %v1021 = vpop.f32.mrf.mxu0
    %v1022 = vadd.f32 %v917, %v1021
    %1023 = vmatmul.f32.gmra.mxu0 %v623
    %v1024 = vpop.f32.mrf.mxu0
    %v1025 = vadd.f32 %v922, %v1024
    %1026 = vmatmul.f32.gmra.mxu0 %v625
    %v1027 = vpop.f32.mrf.mxu0
    %v1028 = vadd.f32 %v927, %v1027
    %1029 = vmatmul.f32.gmra.mxu0 %v627
    %v1030 = vpop.f32.mrf.mxu0
    %v1031 = vadd.f32 %v932, %v1030
    %1032 = vdwg.mxu0
    %1033 = vmatpush.msra.mxu0 0.0
    %1034 = vmatpush.msra.mxu0 0.0
    %1035 = vmatpush.msra.mxu0 0.0
    %1036 = vmatpush.msra.mxu0 0.0
    %1037 = vmatpush.msra.mxu0 0.0
    %1038 = vmatpush.msra.mxu0 0.0
    %1039 = vmatpush.msra.mxu0 0.0
    %1040 = vmatpush.msra.mxu0 0.0
    %1041 = vmatpush.msra.mxu0 0.0
    %1042 = vmatpush.msra.mxu0 0.0
    %1043 = vmatpush.msra.mxu0 0.0
    %1044 = vmatpush.msra.mxu0 0.0
    %1045 = vmatpush.msra.mxu0 0.0
    %1046 = vmatpush.msra.mxu0 0.0
    %1047 = vmatpush.msra.mxu0 %v900
    %1048 = vmatpush.msra.mxu0 %v897
    %1049 = vmatmul.f32.gmra.mxu0 %v935
    %v1050 = vpop.f32.mrf.mxu0
    %v1051 = vadd.f32 %v1022, %v1050
    %1052 = vmatmul.f32.gmra.mxu0 %v938
    %v1053 = vpop.f32.mrf.mxu0
    %v1054 = vadd.f32 %v1025, %v1053
    %1055 = vmatmul.f32.gmra.mxu0 %v941
    %v1056 = vpop.f32.mrf.mxu0
    %v1057 = vadd.f32 %v1028, %v1056
    %1058 = vmatmul.f32.gmra.mxu0 %v944
    %v1059 = vpop.f32.mrf.mxu0
    %v1060 = vadd.f32 %v1031, %v1059
    %1061 = vdwg.mxu0
    %1062 = vmatpush.msra.mxu0 %v867
    %1063 = vmatpush.msra.mxu0 %v864
    %1064 = vmatpush.msra.mxu0 %v833
    %1065 = vmatpush.msra.mxu0 %v830
    %1066 = vmatpush.msra.mxu0 %v799
    %1067 = vmatpush.msra.mxu0 %v796
    %1068 = vmatpush.msra.mxu0 %v765
    %1069 = vmatpush.msra.mxu0 %v762
    %1070 = vmatpush.msra.mxu0 %v731
    %1071 = vmatpush.msra.mxu0 %v728
    %1072 = vmatpush.msra.mxu0 %v697
    %1073 = vmatpush.msra.mxu0 %v694
    %1074 = vmatpush.msra.mxu0 %v663
    %1075 = vmatpush.msra.mxu0 %v660
    %1076 = vmatpush.msra.mxu0 %v618
    %1077 = vmatpush.msra.mxu0 %v614
    %1078 = vmatmul.f32.gmra.mxu0 %v621
    %v1079 = vpop.f32.mrf.mxu0
    %v1080 = vadd.f32 %v917, %v1079
    %1081 = vmatmul.f32.gmra.mxu0 %v623
    %v1082 = vpop.f32.mrf.mxu0
    %v1083 = vadd.f32 %v922, %v1082
    %1084 = vmatmul.f32.gmra.mxu0 %v625
    %v1085 = vpop.f32.mrf.mxu0
    %v1086 = vadd.f32 %v927, %v1085
    %1087 = vmatmul.f32.gmra.mxu0 %v627
    %v1088 = vpop.f32.mrf.mxu0
    %v1089 = vadd.f32 %v932, %v1088
    %1090 = vdwg.mxu0
    %1091 = vmatpush.msra.mxu0 0.0
    %1092 = vmatpush.msra.mxu0 0.0
    %1093 = vmatpush.msra.mxu0 0.0
    %1094 = vmatpush.msra.mxu0 0.0
    %1095 = vmatpush.msra.mxu0 0.0
    %1096 = vmatpush.msra.mxu0 0.0
    %1097 = vmatpush.msra.mxu0 0.0
    %1098 = vmatpush.msra.mxu0 0.0
    %1099 = vmatpush.msra.mxu0 0.0
    %1100 = vmatpush.msra.mxu0 0.0
    %1101 = vmatpush.msra.mxu0 0.0
    %1102 = vmatpush.msra.mxu0 0.0
    %1103 = vmatpush.msra.mxu0 0.0
    %1104 = vmatpush.msra.mxu0 0.0
    %1105 = vmatpush.msra.mxu0 %v901
    %1106 = vmatpush.msra.mxu0 %v898
    %1107 = vmatmul.f32.gmra.mxu0 %v935
    %v1108 = vpop.f32.mrf.mxu0
    %v1109 = vadd.f32 %v1080, %v1108
    %1110 = vmatmul.f32.gmra.mxu0 %v938
    %v1111 = vpop.f32.mrf.mxu0
    %v1112 = vadd.f32 %v1083, %v1111
    %1113 = vmatmul.f32.gmra.mxu0 %v941
    %v1114 = vpop.f32.mrf.mxu0
    %v1115 = vadd.f32 %v1086, %v1114
    %1116 = vmatmul.f32.gmra.mxu0 %v944
    %v1117 = vpop.f32.mrf.mxu0
    %v1118 = vadd.f32 %v1089, %v1117
    %1119 = vdwg.mxu0
    %1120 = vmatpush.msra.mxu0 %v879
    %1121 = vmatpush.msra.mxu0 %v878
    %1122 = vmatpush.msra.mxu0 %v845
    %1123 = vmatpush.msra.mxu0 %v844
    %1124 = vmatpush.msra.mxu0 %v811
    %1125 = vmatpush.msra.mxu0 %v810
    %1126 = vmatpush.msra.mxu0 %v777
    %1127 = vmatpush.msra.mxu0 %v776
    %1128 = vmatpush.msra.mxu0 %v743
    %1129 = vmatpush.msra.mxu0 %v742
    %1130 = vmatpush.msra.mxu0 %v709
    %1131 = vmatpush.msra.mxu0 %v708
    %1132 = vmatpush.msra.mxu0 %v675
    %1133 = vmatpush.msra.mxu0 %v674
    %1134 = vmatpush.msra.mxu0 %v619
    %1135 = vmatpush.msra.mxu0 %v615
    %1136 = vmatmul.f32.gmra.mxu0 %v621
    %v1137 = vpop.f32.mrf.mxu0
    %v1138 = vadd.f32 %v917, %v1137
    %1139 = vmatmul.f32.gmra.mxu0 %v623
    %v1140 = vpop.f32.mrf.mxu0
    %v1141 = vadd.f32 %v922, %v1140
    %1142 = vmatmul.f32.gmra.mxu0 %v625
    %v1143 = vpop.f32.mrf.mxu0
    %v1144 = vadd.f32 %v927, %v1143
    %1145 = vmatmul.f32.gmra.mxu0 %v627
    %v1146 = vpop.f32.mrf.mxu0
    %v1147 = vadd.f32 %v932, %v1146
    %1148 = vdwg.mxu0
    %1149 = vmatpush.msra.mxu0 0.0
    %1150 = vmatpush.msra.mxu0 0.0
    %1151 = vmatpush.msra.mxu0 0.0
    %1152 = vmatpush.msra.mxu0 0.0
    %1153 = vmatpush.msra.mxu0 0.0
    %1154 = vmatpush.msra.mxu0 0.0
    %1155 = vmatpush.msra.mxu0 0.0
    %1156 = vmatpush.msra.mxu0 0.0
    %1157 = vmatpush.msra.mxu0 0.0
    %1158 = vmatpush.msra.mxu0 0.0
    %1159 = vmatpush.msra.mxu0 0.0
    %1160 = vmatpush.msra.mxu0 0.0
    %1161 = vmatpush.msra.mxu0 0.0
    %1162 = vmatpush.msra.mxu0 0.0
    %1163 = vmatpush.msra.mxu0 %v913
    %1164 = vmatpush.msra.mxu0 %v912
    %1165 = vmatmul.f32.gmra.mxu0 %v935
    %v1166 = vpop.f32.mrf.mxu0
    %v1167 = vadd.f32 %v1138, %v1166
    %1168 = vmatmul.f32.gmra.mxu0 %v938
    %v1169 = vpop.f32.mrf.mxu0
    %v1170 = vadd.f32 %v1141, %v1169
    %1171 = vmatmul.f32.gmra.mxu0 %v941
    %v1172 = vpop.f32.mrf.mxu0
    %v1173 = vadd.f32 %v1144, %v1172
    %1174 = vmatmul.f32.gmra.mxu0 %v944
    %v1175 = vpop.f32.mrf.mxu0
    %v1176 = vadd.f32 %v1147, %v1175
    %1177 = vdwg.mxu0
    %v1178 = vmax.f32 %v993, 0.0
    %v1179 = vmax.f32 %v1051, 0.0
    %v1180 = vmax.f32 %v1109, 0.0
    %v1181 = vmax.f32 %v1167, 0.0
    %v1182 = vmax.f32 %v996, 0.0
    %v1183 = vmax.f32 %v1054, 0.0
    %v1184 = vmax.f32 %v1112, 0.0
    %v1185 = vmax.f32 %v1170, 0.0
    %v1186 = vadd.f32 %v1178, %v999
    %v1187 = vadd.f32 %v1179, %v1057
    %v1188 = vadd.f32 %v1180, %v1115
    %v1189 = vadd.f32 %v1181, %v1173
    %v1190 = vadd.f32 %v1182, %v1002
    %v1191 = vadd.f32 %v1183, %v1060
    %v1192 = vadd.f32 %v1184, %v1118
    %v1193 = vadd.f32 %v1185, %v1176
    %s1194 = scalar_lea.vmem [#allocation2], 128
    %v1195 = vld [vmem:[%s1194] sm:$0xff]
    %v1196 = vld [vmem:[%s1194 + $0x8] sm:$0xff]
    %v1197 = vld [vmem:[%s1194 + $0x10] sm:$0xff]
    %v1198 = vld [vmem:[%s1194 + $0x18] sm:$0xff]
    %v1199 = vld [vmem:[%s1194 + $0x20] sm:$0xff]
    %v1200 = vld [vmem:[%s1194 + $0x28] sm:$0xff]
    %v1201 = vld [vmem:[%s1194 + $0x30] sm:$0xff]
    %v1202 = vld [vmem:[%s1194 + $0x38] sm:$0xff]
    %s1203 = scalar_lea.vmem %s2, 64
    %v1204 = vld [vmem:[%s1203] sm:$0xff]
    %v1205 = vld [vmem:[%s1203 + $0x8] sm:$0xff]
    %v1206 = vld [vmem:[%s1203 + $0x10] sm:$0xff]
    %v1207 = vld [vmem:[%s1203 + $0x18] sm:$0xff]
    %1216 = vrot.lane.b32.xlu0 %v1186, 127
    %v1217 = vpop.permute.xlu0 %1216
    %1218 = vrot.lane.b32.xlu0 %v1187, 127
    %v1219 = vpop.permute.xlu0 %1218
    %1220 = vrot.lane.b32.xlu0 %v1188, 127
    %v1221 = vpop.permute.xlu0 %1220
    %1222 = vrot.lane.b32.xlu0 %v1189, 127
    %v1223 = vpop.permute.xlu0 %1222
    %1224 = vrot.lane.b32.xlu0 %v1190, 127
    %v1225 = vpop.permute.xlu0 %1224
    %1226 = vrot.lane.b32.xlu0 %v1191, 127
    %v1227 = vpop.permute.xlu0 %1226
    %1228 = vrot.lane.b32.xlu0 %v1192, 127
    %v1229 = vpop.permute.xlu0 %1228
    %1230 = vrot.lane.b32.xlu0 %v1193, 127
    %v1231 = vpop.permute.xlu0 %1230
    %v1232 = vsel %vm75, %v1217, %v1219
    %v1233 = vsel %vm75, %v1219, %v1221
    %v1234 = vsel %vm75, %v1221, %v1223
    %v1235 = vsel %vm75, %v1225, %v1227
    %v1236 = vsel %vm75, %v1227, %v1229
    %v1237 = vsel %vm75, %v1229, %v1231
    %v1248 = vsel %vm75, %v1223, %v1217
    %v1249 = vsel %vm75, %v1231, %v1225
    %1250 = vrot.lane.b32.xlu0 %v1186, 126
    %v1251 = vpop.permute.xlu0 %1250
    %1252 = vrot.lane.b32.xlu0 %v1187, 126
    %v1253 = vpop.permute.xlu0 %1252
    %1254 = vrot.lane.b32.xlu0 %v1188, 126
    %v1255 = vpop.permute.xlu0 %1254
    %1256 = vrot.lane.b32.xlu0 %v1189, 126
    %v1257 = vpop.permute.xlu0 %1256
    %1258 = vrot.lane.b32.xlu0 %v1190, 126
    %v1259 = vpop.permute.xlu0 %1258
    %1260 = vrot.lane.b32.xlu0 %v1191, 126
    %v1261 = vpop.permute.xlu0 %1260
    %1262 = vrot.lane.b32.xlu0 %v1192, 126
    %v1263 = vpop.permute.xlu0 %1262
    %1264 = vrot.lane.b32.xlu0 %v1193, 126
    %v1265 = vpop.permute.xlu0 %1264
    %v1266 = vsel %vm110, %v1251, %v1253
    %v1267 = vsel %vm110, %v1253, %v1255
    %v1268 = vsel %vm110, %v1255, %v1257
    %v1269 = vsel %vm110, %v1259, %v1261
    %v1270 = vsel %vm110, %v1261, %v1263
    %v1271 = vsel %vm110, %v1263, %v1265
    %v1282 = vsel %vm110, %v1257, %v1251
    %v1283 = vsel %vm110, %v1265, %v1259
    %1284 = vrot.lane.b32.xlu0 %v1186, 112
    %v1285 = vpop.permute.xlu0 %1284
    %1286 = vrot.lane.b32.xlu0 %v1187, 112
    %v1287 = vpop.permute.xlu0 %1286
    %1288 = vrot.lane.b32.xlu0 %v1188, 112
    %v1289 = vpop.permute.xlu0 %1288
    %1290 = vrot.lane.b32.xlu0 %v1189, 112
    %v1291 = vpop.permute.xlu0 %1290
    %1292 = vrot.lane.b32.xlu0 %v1190, 112
    %v1293 = vpop.permute.xlu0 %1292
    %1294 = vrot.lane.b32.xlu0 %v1191, 112
    %v1295 = vpop.permute.xlu0 %1294
    %1296 = vrot.lane.b32.xlu0 %v1192, 112
    %v1297 = vpop.permute.xlu0 %1296
    %1298 = vrot.lane.b32.xlu0 %v1193, 112
    %v1299 = vpop.permute.xlu0 %1298
    %v1300 = vsel %vm145, %v1285, %v1287
    %v1301 = vsel %vm145, %v1287, %v1289
    %v1302 = vsel %vm145, %v1289, %v1291
    %v1303 = vsel %vm145, %v1293, %v1295
    %v1304 = vsel %vm145, %v1295, %v1297
    %v1305 = vsel %vm145, %v1297, %v1299
    %v1316 = vsel %vm145, %v1291, %v1285
    %v1317 = vsel %vm145, %v1299, %v1293
    %1318 = vrot.lane.b32.xlu0 %v1186, 111
    %v1319 = vpop.permute.xlu0 %1318
    %1320 = vrot.lane.b32.xlu0 %v1187, 111
    %v1321 = vpop.permute.xlu0 %1320
    %1322 = vrot.lane.b32.xlu0 %v1188, 111
    %v1323 = vpop.permute.xlu0 %1322
    %1324 = vrot.lane.b32.xlu0 %v1189, 111
    %v1325 = vpop.permute.xlu0 %1324
    %1326 = vrot.lane.b32.xlu0 %v1190, 111
    %v1327 = vpop.permute.xlu0 %1326
    %1328 = vrot.lane.b32.xlu0 %v1191, 111
    %v1329 = vpop.permute.xlu0 %1328
    %1330 = vrot.lane.b32.xlu0 %v1192, 111
    %v1331 = vpop.permute.xlu0 %1330
    %1332 = vrot.lane.b32.xlu0 %v1193, 111
    %v1333 = vpop.permute.xlu0 %1332
    %v1334 = vsel %vm180, %v1319, %v1321
    %v1335 = vsel %vm180, %v1321, %v1323
    %v1336 = vsel %vm180, %v1323, %v1325
    %v1337 = vsel %vm180, %v1327, %v1329
    %v1338 = vsel %vm180, %v1329, %v1331
    %v1339 = vsel %vm180, %v1331, %v1333
    %v1350 = vsel %vm180, %v1325, %v1319
    %v1351 = vsel %vm180, %v1333, %v1327
    %1352 = vrot.lane.b32.xlu0 %v1186, 110
    %v1353 = vpop.permute.xlu0 %1352
    %1354 = vrot.lane.b32.xlu0 %v1187, 110
    %v1355 = vpop.permute.xlu0 %1354
    %1356 = vrot.lane.b32.xlu0 %v1188, 110
    %v1357 = vpop.permute.xlu0 %1356
    %1358 = vrot.lane.b32.xlu0 %v1189, 110
    %v1359 = vpop.permute.xlu0 %1358
    %1360 = vrot.lane.b32.xlu0 %v1190, 110
    %v1361 = vpop.permute.xlu0 %1360
    %1362 = vrot.lane.b32.xlu0 %v1191, 110
    %v1363 = vpop.permute.xlu0 %1362
    %1364 = vrot.lane.b32.xlu0 %v1192, 110
    %v1365 = vpop.permute.xlu0 %1364
    %1366 = vrot.lane.b32.xlu0 %v1193, 110
    %v1367 = vpop.permute.xlu0 %1366
    %v1368 = vsel %vm215, %v1353, %v1355
    %v1369 = vsel %vm215, %v1355, %v1357
    %v1370 = vsel %vm215, %v1357, %v1359
    %v1371 = vsel %vm215, %v1361, %v1363
    %v1372 = vsel %vm215, %v1363, %v1365
    %v1373 = vsel %vm215, %v1365, %v1367
    %v1384 = vsel %vm215, %v1359, %v1353
    %v1385 = vsel %vm215, %v1367, %v1361
    %1386 = vrot.lane.b32.xlu0 %v1186, 96
    %v1387 = vpop.permute.xlu0 %1386
    %1388 = vrot.lane.b32.xlu0 %v1187, 96
    %v1389 = vpop.permute.xlu0 %1388
    %1390 = vrot.lane.b32.xlu0 %v1188, 96
    %v1391 = vpop.permute.xlu0 %1390
    %1392 = vrot.lane.b32.xlu0 %v1189, 96
    %v1393 = vpop.permute.xlu0 %1392
    %1394 = vrot.lane.b32.xlu0 %v1190, 96
    %v1395 = vpop.permute.xlu0 %1394
    %1396 = vrot.lane.b32.xlu0 %v1191, 96
    %v1397 = vpop.permute.xlu0 %1396
    %1398 = vrot.lane.b32.xlu0 %v1192, 96
    %v1399 = vpop.permute.xlu0 %1398
    %1400 = vrot.lane.b32.xlu0 %v1193, 96
    %v1401 = vpop.permute.xlu0 %1400
    %v1402 = vsel %vm250, %v1387, %v1389
    %v1403 = vsel %vm250, %v1389, %v1391
    %v1404 = vsel %vm250, %v1391, %v1393
    %v1405 = vsel %vm250, %v1395, %v1397
    %v1406 = vsel %vm250, %v1397, %v1399
    %v1407 = vsel %vm250, %v1399, %v1401
    %v1418 = vsel %vm250, %v1393, %v1387
    %v1419 = vsel %vm250, %v1401, %v1395
    %1420 = vrot.lane.b32.xlu0 %v1186, 95
    %v1421 = vpop.permute.xlu0 %1420
    %1422 = vrot.lane.b32.xlu0 %v1187, 95
    %v1423 = vpop.permute.xlu0 %1422
    %1424 = vrot.lane.b32.xlu0 %v1188, 95
    %v1425 = vpop.permute.xlu0 %1424
    %1426 = vrot.lane.b32.xlu0 %v1189, 95
    %v1427 = vpop.permute.xlu0 %1426
    %1428 = vrot.lane.b32.xlu0 %v1190, 95
    %v1429 = vpop.permute.xlu0 %1428
    %1430 = vrot.lane.b32.xlu0 %v1191, 95
    %v1431 = vpop.permute.xlu0 %1430
    %1432 = vrot.lane.b32.xlu0 %v1192, 95
    %v1433 = vpop.permute.xlu0 %1432
    %1434 = vrot.lane.b32.xlu0 %v1193, 95
    %v1435 = vpop.permute.xlu0 %1434
    %v1436 = vsel %vm285, %v1421, %v1423
    %v1437 = vsel %vm285, %v1423, %v1425
    %v1438 = vsel %vm285, %v1425, %v1427
    %v1439 = vsel %vm285, %v1429, %v1431
    %v1440 = vsel %vm285, %v1431, %v1433
    %v1441 = vsel %vm285, %v1433, %v1435
    %v1452 = vsel %vm285, %v1427, %v1421
    %v1453 = vsel %vm285, %v1435, %v1429
    %1454 = vrot.lane.b32.xlu0 %v1186, 94
    %v1455 = vpop.permute.xlu0 %1454
    %1456 = vrot.lane.b32.xlu0 %v1187, 94
    %v1457 = vpop.permute.xlu0 %1456
    %1458 = vrot.lane.b32.xlu0 %v1188, 94
    %v1459 = vpop.permute.xlu0 %1458
    %1460 = vrot.lane.b32.xlu0 %v1189, 94
    %v1461 = vpop.permute.xlu0 %1460
    %1462 = vrot.lane.b32.xlu0 %v1190, 94
    %v1463 = vpop.permute.xlu0 %1462
    %1464 = vrot.lane.b32.xlu0 %v1191, 94
    %v1465 = vpop.permute.xlu0 %1464
    %1466 = vrot.lane.b32.xlu0 %v1192, 94
    %v1467 = vpop.permute.xlu0 %1466
    %1468 = vrot.lane.b32.xlu0 %v1193, 94
    %v1469 = vpop.permute.xlu0 %1468
    %v1470 = vsel %vm320, %v1455, %v1457
    %v1471 = vsel %vm320, %v1457, %v1459
    %v1472 = vsel %vm320, %v1459, %v1461
    %v1473 = vsel %vm320, %v1463, %v1465
    %v1474 = vsel %vm320, %v1465, %v1467
    %v1475 = vsel %vm320, %v1467, %v1469
    %v1486 = vsel %vm320, %v1461, %v1455
    %v1487 = vsel %vm320, %v1469, %v1463
    %1489 = vset.pattern.permute.xlu0 0
    %1490 = vperm.xlu0 %1489, %v1204
    %v1491 = vpop.permute.xlu0 %1490
    %1494 = vset.pattern.permute.xlu0 0
    %1495 = vperm.xlu0 %1494, %v1205
    %v1496 = vpop.permute.xlu0 %1495
    %1499 = vset.pattern.permute.xlu0 0
    %1500 = vperm.xlu0 %1499, %v1206
    %v1501 = vpop.permute.xlu0 %1500
    %1504 = vset.pattern.permute.xlu0 0
    %1505 = vperm.xlu0 %1504, %v1207
    %v1506 = vpop.permute.xlu0 %1505
    %v1509 = vsel %vm359, %v1196, 0
    %v1512 = vsel %vm359, %v1198, 0
    %v1515 = vsel %vm359, %v1200, 0
    %v1518 = vsel %vm359, %v1202, 0
    %1520 = vmatpush.msra.mxu0 %v1439
    %1521 = vmatpush.msra.mxu0 %v1436
    %1522 = vmatpush.msra.mxu0 %v1405
    %1523 = vmatpush.msra.mxu0 %v1402
    %1524 = vmatpush.msra.mxu0 %v1371
    %1525 = vmatpush.msra.mxu0 %v1368
    %1526 = vmatpush.msra.mxu0 %v1337
    %1527 = vmatpush.msra.mxu0 %v1334
    %1528 = vmatpush.msra.mxu0 %v1303
    %1529 = vmatpush.msra.mxu0 %v1300
    %1530 = vmatpush.msra.mxu0 %v1269
    %1531 = vmatpush.msra.mxu0 %v1266
    %1532 = vmatpush.msra.mxu0 %v1235
    %1533 = vmatpush.msra.mxu0 %v1232
    %1534 = vmatpush.msra.mxu0 %v1190
    %1535 = vmatpush.msra.mxu0 %v1186
    %1536 = vmatmul.f32.gmra.mxu0 %v1195
    %v1537 = vpop.f32.mrf.mxu0
    %v1538 = vadd.f32 %v1491, %v1537
    %1539 = vmatmul.f32.gmra.mxu0 %v1197
    %v1540 = vpop.f32.mrf.mxu0
    %v1541 = vadd.f32 %v1496, %v1540
    %1542 = vmatmul.f32.gmra.mxu0 %v1199
    %v1543 = vpop.f32.mrf.mxu0
    %v1544 = vadd.f32 %v1501, %v1543
    %1545 = vmatmul.f32.gmra.mxu0 %v1201
    %v1546 = vpop.f32.mrf.mxu0
    %v1547 = vadd.f32 %v1506, %v1546
    %1548 = vdwg.mxu0
    %1549 = vmatpush.msra.mxu0 0.0
    %1550 = vmatpush.msra.mxu0 0.0
    %1551 = vmatpush.msra.mxu0 0.0
    %1552 = vmatpush.msra.mxu0 0.0
    %1553 = vmatpush.msra.mxu0 0.0
    %1554 = vmatpush.msra.mxu0 0.0
    %1555 = vmatpush.msra.mxu0 0.0
    %1556 = vmatpush.msra.mxu0 0.0
    %1557 = vmatpush.msra.mxu0 0.0
    %1558 = vmatpush.msra.mxu0 0.0
    %1559 = vmatpush.msra.mxu0 0.0
    %1560 = vmatpush.msra.mxu0 0.0
    %1561 = vmatpush.msra.mxu0 0.0
    %1562 = vmatpush.msra.mxu0 0.0
    %1563 = vmatpush.msra.mxu0 %v1473
    %1564 = vmatpush.msra.mxu0 %v1470
    %1565 = vmatmul.f32.gmra.mxu0 %v1509
    %v1566 = vpop.f32.mrf.mxu0
    %v1567 = vadd.f32 %v1538, %v1566
    %1568 = vmatmul.f32.gmra.mxu0 %v1512
    %v1569 = vpop.f32.mrf.mxu0
    %v1570 = vadd.f32 %v1541, %v1569
    %1571 = vmatmul.f32.gmra.mxu0 %v1515
    %v1572 = vpop.f32.mrf.mxu0
    %v1573 = vadd.f32 %v1544, %v1572
    %1574 = vmatmul.f32.gmra.mxu0 %v1518
    %v1575 = vpop.f32.mrf.mxu0
    %v1576 = vadd.f32 %v1547, %v1575
    %1577 = vdwg.mxu0
    %1578 = vmatpush.msra.mxu0 %v1440
    %1579 = vmatpush.msra.mxu0 %v1437
    %1580 = vmatpush.msra.mxu0 %v1406
    %1581 = vmatpush.msra.mxu0 %v1403
    %1582 = vmatpush.msra.mxu0 %v1372
    %1583 = vmatpush.msra.mxu0 %v1369
    %1584 = vmatpush.msra.mxu0 %v1338
    %1585 = vmatpush.msra.mxu0 %v1335
    %1586 = vmatpush.msra.mxu0 %v1304
    %1587 = vmatpush.msra.mxu0 %v1301
    %1588 = vmatpush.msra.mxu0 %v1270
    %1589 = vmatpush.msra.mxu0 %v1267
    %1590 = vmatpush.msra.mxu0 %v1236
    %1591 = vmatpush.msra.mxu0 %v1233
    %1592 = vmatpush.msra.mxu0 %v1191
    %1593 = vmatpush.msra.mxu0 %v1187
    %1594 = vmatmul.f32.gmra.mxu0 %v1195
    %v1595 = vpop.f32.mrf.mxu0
    %v1596 = vadd.f32 %v1491, %v1595
    %1597 = vmatmul.f32.gmra.mxu0 %v1197
    %v1598 = vpop.f32.mrf.mxu0
    %v1599 = vadd.f32 %v1496, %v1598
    %1600 = vmatmul.f32.gmra.mxu0 %v1199
    %v1601 = vpop.f32.mrf.mxu0
    %v1602 = vadd.f32 %v1501, %v1601
    %1603 = vmatmul.f32.gmra.mxu0 %v1201
    %v1604 = vpop.f32.mrf.mxu0
    %v1605 = vadd.f32 %v1506, %v1604
    %1606 = vdwg.mxu0
    %1607 = vmatpush.msra.mxu0 0.0
    %1608 = vmatpush.msra.mxu0 0.0
    %1609 = vmatpush.msra.mxu0 0.0
    %1610 = vmatpush.msra.mxu0 0.0
    %1611 = vmatpush.msra.mxu0 0.0
    %1612 = vmatpush.msra.mxu0 0.0
    %1613 = vmatpush.msra.mxu0 0.0
    %1614 = vmatpush.msra.mxu0 0.0
    %1615 = vmatpush.msra.mxu0 0.0
    %1616 = vmatpush.msra.mxu0 0.0
    %1617 = vmatpush.msra.mxu0 0.0
    %1618 = vmatpush.msra.mxu0 0.0
    %1619 = vmatpush.msra.mxu0 0.0
    %1620 = vmatpush.msra.mxu0 0.0
    %1621 = vmatpush.msra.mxu0 %v1474
    %1622 = vmatpush.msra.mxu0 %v1471
    %1623 = vmatmul.f32.gmra.mxu0 %v1509
    %v1624 = vpop.f32.mrf.mxu0
    %v1625 = vadd.f32 %v1596, %v1624
    %1626 = vmatmul.f32.gmra.mxu0 %v1512
    %v1627 = vpop.f32.mrf.mxu0
    %v1628 = vadd.f32 %v1599, %v1627
    %1629 = vmatmul.f32.gmra.mxu0 %v1515
    %v1630 = vpop.f32.mrf.mxu0
    %v1631 = vadd.f32 %v1602, %v1630
    %1632 = vmatmul.f32.gmra.mxu0 %v1518
    %v1633 = vpop.f32.mrf.mxu0
    %v1634 = vadd.f32 %v1605, %v1633
    %1635 = vdwg.mxu0
    %1636 = vmatpush.msra.mxu0 %v1441
    %1637 = vmatpush.msra.mxu0 %v1438
    %1638 = vmatpush.msra.mxu0 %v1407
    %1639 = vmatpush.msra.mxu0 %v1404
    %1640 = vmatpush.msra.mxu0 %v1373
    %1641 = vmatpush.msra.mxu0 %v1370
    %1642 = vmatpush.msra.mxu0 %v1339
    %1643 = vmatpush.msra.mxu0 %v1336
    %1644 = vmatpush.msra.mxu0 %v1305
    %1645 = vmatpush.msra.mxu0 %v1302
    %1646 = vmatpush.msra.mxu0 %v1271
    %1647 = vmatpush.msra.mxu0 %v1268
    %1648 = vmatpush.msra.mxu0 %v1237
    %1649 = vmatpush.msra.mxu0 %v1234
    %1650 = vmatpush.msra.mxu0 %v1192
    %1651 = vmatpush.msra.mxu0 %v1188
    %1652 = vmatmul.f32.gmra.mxu0 %v1195
    %v1653 = vpop.f32.mrf.mxu0
    %v1654 = vadd.f32 %v1491, %v1653
    %1655 = vmatmul.f32.gmra.mxu0 %v1197
    %v1656 = vpop.f32.mrf.mxu0
    %v1657 = vadd.f32 %v1496, %v1656
    %1658 = vmatmul.f32.gmra.mxu0 %v1199
    %v1659 = vpop.f32.mrf.mxu0
    %v1660 = vadd.f32 %v1501, %v1659
    %1661 = vmatmul.f32.gmra.mxu0 %v1201
    %v1662 = vpop.f32.mrf.mxu0
    %v1663 = vadd.f32 %v1506, %v1662
    %1664 = vdwg.mxu0
    %1665 = vmatpush.msra.mxu0 0.0
    %1666 = vmatpush.msra.mxu0 0.0
    %1667 = vmatpush.msra.mxu0 0.0
    %1668 = vmatpush.msra.mxu0 0.0
    %1669 = vmatpush.msra.mxu0 0.0
    %1670 = vmatpush.msra.mxu0 0.0
    %1671 = vmatpush.msra.mxu0 0.0
    %1672 = vmatpush.msra.mxu0 0.0
    %1673 = vmatpush.msra.mxu0 0.0
    %1674 = vmatpush.msra.mxu0 0.0
    %1675 = vmatpush.msra.mxu0 0.0
    %1676 = vmatpush.msra.mxu0 0.0
    %1677 = vmatpush.msra.mxu0 0.0
    %1678 = vmatpush.msra.mxu0 0.0
    %1679 = vmatpush.msra.mxu0 %v1475
    %1680 = vmatpush.msra.mxu0 %v1472
    %1681 = vmatmul.f32.gmra.mxu0 %v1509
    %v1682 = vpop.f32.mrf.mxu0
    %v1683 = vadd.f32 %v1654, %v1682
    %1684 = vmatmul.f32.gmra.mxu0 %v1512
    %v1685 = vpop.f32.mrf.mxu0
    %v1686 = vadd.f32 %v1657, %v1685
    %1687 = vmatmul.f32.gmra.mxu0 %v1515
    %v1688 = vpop.f32.mrf.mxu0
    %v1689 = vadd.f32 %v1660, %v1688
    %1690 = vmatmul.f32.gmra.mxu0 %v1518
    %v1691 = vpop.f32.mrf.mxu0
    %v1692 = vadd.f32 %v1663, %v1691
    %1693 = vdwg.mxu0
    %1694 = vmatpush.msra.mxu0 %v1453
    %1695 = vmatpush.msra.mxu0 %v1452
    %1696 = vmatpush.msra.mxu0 %v1419
    %1697 = vmatpush.msra.mxu0 %v1418
    %1698 = vmatpush.msra.mxu0 %v1385
    %1699 = vmatpush.msra.mxu0 %v1384
    %1700 = vmatpush.msra.mxu0 %v1351
    %1701 = vmatpush.msra.mxu0 %v1350
    %1702 = vmatpush.msra.mxu0 %v1317
    %1703 = vmatpush.msra.mxu0 %v1316
    %1704 = vmatpush.msra.mxu0 %v1283
    %1705 = vmatpush.msra.mxu0 %v1282
    %1706 = vmatpush.msra.mxu0 %v1249
    %1707 = vmatpush.msra.mxu0 %v1248
    %1708 = vmatpush.msra.mxu0 %v1193
    %1709 = vmatpush.msra.mxu0 %v1189
    %1710 = vmatmul.f32.gmra.mxu0 %v1195
    %v1711 = vpop.f32.mrf.mxu0
    %v1712 = vadd.f32 %v1491, %v1711
    %1713 = vmatmul.f32.gmra.mxu0 %v1197
    %v1714 = vpop.f32.mrf.mxu0
    %v1715 = vadd.f32 %v1496, %v1714
    %1716 = vmatmul.f32.gmra.mxu0 %v1199
    %v1717 = vpop.f32.mrf.mxu0
    %v1718 = vadd.f32 %v1501, %v1717
    %1719 = vmatmul.f32.gmra.mxu0 %v1201
    %v1720 = vpop.f32.mrf.mxu0
    %v1721 = vadd.f32 %v1506, %v1720
    %1722 = vdwg.mxu0
    %1723 = vmatpush.msra.mxu0 0.0
    %1724 = vmatpush.msra.mxu0 0.0
    %1725 = vmatpush.msra.mxu0 0.0
    %1726 = vmatpush.msra.mxu0 0.0
    %1727 = vmatpush.msra.mxu0 0.0
    %1728 = vmatpush.msra.mxu0 0.0
    %1729 = vmatpush.msra.mxu0 0.0
    %1730 = vmatpush.msra.mxu0 0.0
    %1731 = vmatpush.msra.mxu0 0.0
    %1732 = vmatpush.msra.mxu0 0.0
    %1733 = vmatpush.msra.mxu0 0.0
    %1734 = vmatpush.msra.mxu0 0.0
    %1735 = vmatpush.msra.mxu0 0.0
    %1736 = vmatpush.msra.mxu0 0.0
    %1737 = vmatpush.msra.mxu0 %v1487
    %1738 = vmatpush.msra.mxu0 %v1486
    %1739 = vmatmul.f32.gmra.mxu0 %v1509
    %v1740 = vpop.f32.mrf.mxu0
    %v1741 = vadd.f32 %v1712, %v1740
    %1742 = vmatmul.f32.gmra.mxu0 %v1512
    %v1743 = vpop.f32.mrf.mxu0
    %v1744 = vadd.f32 %v1715, %v1743
    %1745 = vmatmul.f32.gmra.mxu0 %v1515
    %v1746 = vpop.f32.mrf.mxu0
    %v1747 = vadd.f32 %v1718, %v1746
    %1748 = vmatmul.f32.gmra.mxu0 %v1518
    %v1749 = vpop.f32.mrf.mxu0
    %v1750 = vadd.f32 %v1721, %v1749
    %1751 = vdwg.mxu0
    %v1752 = vmax.f32 %v1567, 0.0
    %v1753 = vmax.f32 %v1625, 0.0
    %v1754 = vmax.f32 %v1683, 0.0
    %v1755 = vmax.f32 %v1741, 0.0
    %v1756 = vmax.f32 %v1570, 0.0
    %v1757 = vmax.f32 %v1628, 0.0
    %v1758 = vmax.f32 %v1686, 0.0
    %v1759 = vmax.f32 %v1744, 0.0
    %v1760 = vadd.f32 %v1752, %v1573
    %v1761 = vadd.f32 %v1753, %v1631
    %v1762 = vadd.f32 %v1754, %v1689
    %v1763 = vadd.f32 %v1755, %v1747
    %v1764 = vadd.f32 %v1756, %v1576
    %v1765 = vadd.f32 %v1757, %v1634
    %v1766 = vadd.f32 %v1758, %v1692
    %v1767 = vadd.f32 %v1759, %v1750
    %s1768 = scalar_lea.vmem [#allocation2], 192
    %v1769 = vld [vmem:[%s1768] sm:$0xff]
    %v1770 = vld [vmem:[%s1768 + $0x8] sm:$0xff]
    %v1771 = vld [vmem:[%s1768 + $0x10] sm:$0xff]
    %v1772 = vld [vmem:[%s1768 + $0x18] sm:$0xff]
    %v1773 = vld [vmem:[%s1768 + $0x20] sm:$0xff]
    %v1774 = vld [vmem:[%s1768 + $0x28] sm:$0xff]
    %v1775 = vld [vmem:[%s1768 + $0x30] sm:$0xff]
    %v1776 = vld [vmem:[%s1768 + $0x38] sm:$0xff]
    %s1777 = scalar_lea.vmem %s2, 96
    %v1778 = vld [vmem:[%s1777] sm:$0xff]
    %v1779 = vld [vmem:[%s1777 + $0x8] sm:$0xff]
    %v1780 = vld [vmem:[%s1777 + $0x10] sm:$0xff]
    %v1781 = vld [vmem:[%s1777 + $0x18] sm:$0xff]
    %1790 = vrot.lane.b32.xlu0 %v1760, 127
    %v1791 = vpop.permute.xlu0 %1790
    %1792 = vrot.lane.b32.xlu0 %v1761, 127
    %v1793 = vpop.permute.xlu0 %1792
    %1794 = vrot.lane.b32.xlu0 %v1762, 127
    %v1795 = vpop.permute.xlu0 %1794
    %1796 = vrot.lane.b32.xlu0 %v1763, 127
    %v1797 = vpop.permute.xlu0 %1796
    %1798 = vrot.lane.b32.xlu0 %v1764, 127
    %v1799 = vpop.permute.xlu0 %1798
    %1800 = vrot.lane.b32.xlu0 %v1765, 127
    %v1801 = vpop.permute.xlu0 %1800
    %1802 = vrot.lane.b32.xlu0 %v1766, 127
    %v1803 = vpop.permute.xlu0 %1802
    %1804 = vrot.lane.b32.xlu0 %v1767, 127
    %v1805 = vpop.permute.xlu0 %1804
    %v1806 = vsel %vm75, %v1791, %v1793
    %v1807 = vsel %vm75, %v1793, %v1795
    %v1808 = vsel %vm75, %v1795, %v1797
    %v1809 = vsel %vm75, %v1799, %v1801
    %v1810 = vsel %vm75, %v1801, %v1803
    %v1811 = vsel %vm75, %v1803, %v1805
    %v1822 = vsel %vm75, %v1797, %v1791
    %v1823 = vsel %vm75, %v1805, %v1799
    %1824 = vrot.lane.b32.xlu0 %v1760, 126
    %v1825 = vpop.permute.xlu0 %1824
    %1826 = vrot.lane.b32.xlu0 %v1761, 126
    %v1827 = vpop.permute.xlu0 %1826
    %1828 = vrot.lane.b32.xlu0 %v1762, 126
    %v1829 = vpop.permute.xlu0 %1828
    %1830 = vrot.lane.b32.xlu0 %v1763, 126
    %v1831 = vpop.permute.xlu0 %1830
    %1832 = vrot.lane.b32.xlu0 %v1764, 126
    %v1833 = vpop.permute.xlu0 %1832
    %1834 = vrot.lane.b32.xlu0 %v1765, 126
    %v1835 = vpop.permute.xlu0 %1834
    %1836 = vrot.lane.b32.xlu0 %v1766, 126
    %v1837 = vpop.permute.xlu0 %1836
    %1838 = vrot.lane.b32.xlu0 %v1767, 126
    %v1839 = vpop.permute.xlu0 %1838
    %v1840 = vsel %vm110, %v1825, %v1827
    %v1841 = vsel %vm110, %v1827, %v1829
    %v1842 = vsel %vm110, %v1829, %v1831
    %v1843 = vsel %vm110, %v1833, %v1835
    %v1844 = vsel %vm110, %v1835, %v1837
    %v1845 = vsel %vm110, %v1837, %v1839
    %v1856 = vsel %vm110, %v1831, %v1825
    %v1857 = vsel %vm110, %v1839, %v1833
    %1858 = vrot.lane.b32.xlu0 %v1760, 112
    %v1859 = vpop.permute.xlu0 %1858
    %1860 = vrot.lane.b32.xlu0 %v1761, 112
    %v1861 = vpop.permute.xlu0 %1860
    %1862 = vrot.lane.b32.xlu0 %v1762, 112
    %v1863 = vpop.permute.xlu0 %1862
    %1864 = vrot.lane.b32.xlu0 %v1763, 112
    %v1865 = vpop.permute.xlu0 %1864
    %1866 = vrot.lane.b32.xlu0 %v1764, 112
    %v1867 = vpop.permute.xlu0 %1866
    %1868 = vrot.lane.b32.xlu0 %v1765, 112
    %v1869 = vpop.permute.xlu0 %1868
    %1870 = vrot.lane.b32.xlu0 %v1766, 112
    %v1871 = vpop.permute.xlu0 %1870
    %1872 = vrot.lane.b32.xlu0 %v1767, 112
    %v1873 = vpop.permute.xlu0 %1872
    %v1874 = vsel %vm145, %v1859, %v1861
    %v1875 = vsel %vm145, %v1861, %v1863
    %v1876 = vsel %vm145, %v1863, %v1865
    %v1877 = vsel %vm145, %v1867, %v1869
    %v1878 = vsel %vm145, %v1869, %v1871
    %v1879 = vsel %vm145, %v1871, %v1873
    %v1890 = vsel %vm145, %v1865, %v1859
    %v1891 = vsel %vm145, %v1873, %v1867
    %1892 = vrot.lane.b32.xlu0 %v1760, 111
    %v1893 = vpop.permute.xlu0 %1892
    %1894 = vrot.lane.b32.xlu0 %v1761, 111
    %v1895 = vpop.permute.xlu0 %1894
    %1896 = vrot.lane.b32.xlu0 %v1762, 111
    %v1897 = vpop.permute.xlu0 %1896
    %1898 = vrot.lane.b32.xlu0 %v1763, 111
    %v1899 = vpop.permute.xlu0 %1898
    %1900 = vrot.lane.b32.xlu0 %v1764, 111
    %v1901 = vpop.permute.xlu0 %1900
    %1902 = vrot.lane.b32.xlu0 %v1765, 111
    %v1903 = vpop.permute.xlu0 %1902
    %1904 = vrot.lane.b32.xlu0 %v1766, 111
    %v1905 = vpop.permute.xlu0 %1904
    %1906 = vrot.lane.b32.xlu0 %v1767, 111
    %v1907 = vpop.permute.xlu0 %1906
    %v1908 = vsel %vm180, %v1893, %v1895
    %v1909 = vsel %vm180, %v1895, %v1897
    %v1910 = vsel %vm180, %v1897, %v1899
    %v1911 = vsel %vm180, %v1901, %v1903
    %v1912 = vsel %vm180, %v1903, %v1905
    %v1913 = vsel %vm180, %v1905, %v1907
    %v1924 = vsel %vm180, %v1899, %v1893
    %v1925 = vsel %vm180, %v1907, %v1901
    %1926 = vrot.lane.b32.xlu0 %v1760, 110
    %v1927 = vpop.permute.xlu0 %1926
    %1928 = vrot.lane.b32.xlu0 %v1761, 110
    %v1929 = vpop.permute.xlu0 %1928
    %1930 = vrot.lane.b32.xlu0 %v1762, 110
    %v1931 = vpop.permute.xlu0 %1930
    %1932 = vrot.lane.b32.xlu0 %v1763, 110
    %v1933 = vpop.permute.xlu0 %1932
    %1934 = vrot.lane.b32.xlu0 %v1764, 110
    %v1935 = vpop.permute.xlu0 %1934
    %1936 = vrot.lane.b32.xlu0 %v1765, 110
    %v1937 = vpop.permute.xlu0 %1936
    %1938 = vrot.lane.b32.xlu0 %v1766, 110
    %v1939 = vpop.permute.xlu0 %1938
    %1940 = vrot.lane.b32.xlu0 %v1767, 110
    %v1941 = vpop.permute.xlu0 %1940
    %v1942 = vsel %vm215, %v1927, %v1929
    %v1943 = vsel %vm215, %v1929, %v1931
    %v1944 = vsel %vm215, %v1931, %v1933
    %v1945 = vsel %vm215, %v1935, %v1937
    %v1946 = vsel %vm215, %v1937, %v1939
    %v1947 = vsel %vm215, %v1939, %v1941
    %v1958 = vsel %vm215, %v1933, %v1927
    %v1959 = vsel %vm215, %v1941, %v1935
    %1960 = vrot.lane.b32.xlu0 %v1760, 96
    %v1961 = vpop.permute.xlu0 %1960
    %1962 = vrot.lane.b32.xlu0 %v1761, 96
    %v1963 = vpop.permute.xlu0 %1962
    %1964 = vrot.lane.b32.xlu0 %v1762, 96
    %v1965 = vpop.permute.xlu0 %1964
    %1966 = vrot.lane.b32.xlu0 %v1763, 96
    %v1967 = vpop.permute.xlu0 %1966
    %1968 = vrot.lane.b32.xlu0 %v1764, 96
    %v1969 = vpop.permute.xlu0 %1968
    %1970 = vrot.lane.b32.xlu0 %v1765, 96
    %v1971 = vpop.permute.xlu0 %1970
    %1972 = vrot.lane.b32.xlu0 %v1766, 96
    %v1973 = vpop.permute.xlu0 %1972
    %1974 = vrot.lane.b32.xlu0 %v1767, 96
    %v1975 = vpop.permute.xlu0 %1974
    %v1976 = vsel %vm250, %v1961, %v1963
    %v1977 = vsel %vm250, %v1963, %v1965
    %v1978 = vsel %vm250, %v1965, %v1967
    %v1979 = vsel %vm250, %v1969, %v1971
    %v1980 = vsel %vm250, %v1971, %v1973
    %v1981 = vsel %vm250, %v1973, %v1975
    %v1992 = vsel %vm250, %v1967, %v1961
    %v1993 = vsel %vm250, %v1975, %v1969
    %1994 = vrot.lane.b32.xlu0 %v1760, 95
    %v1995 = vpop.permute.xlu0 %1994
    %1996 = vrot.lane.b32.xlu0 %v1761, 95
    %v1997 = vpop.permute.xlu0 %1996
    %1998 = vrot.lane.b32.xlu0 %v1762, 95
    %v1999 = vpop.permute.xlu0 %1998
    %2000 = vrot.lane.b32.xlu0 %v1763, 95
    %v2001 = vpop.permute.xlu0 %2000
    %2002 = vrot.lane.b32.xlu0 %v1764, 95
    %v2003 = vpop.permute.xlu0 %2002
    %2004 = vrot.lane.b32.xlu0 %v1765, 95
    %v2005 = vpop.permute.xlu0 %2004
    %2006 = vrot.lane.b32.xlu0 %v1766, 95
    %v2007 = vpop.permute.xlu0 %2006
    %2008 = vrot.lane.b32.xlu0 %v1767, 95
    %v2009 = vpop.permute.xlu0 %2008
    %v2010 = vsel %vm285, %v1995, %v1997
    %v2011 = vsel %vm285, %v1997, %v1999
    %v2012 = vsel %vm285, %v1999, %v2001
    %v2013 = vsel %vm285, %v2003, %v2005
    %v2014 = vsel %vm285, %v2005, %v2007
    %v2015 = vsel %vm285, %v2007, %v2009
    %v2026 = vsel %vm285, %v2001, %v1995
    %v2027 = vsel %vm285, %v2009, %v2003
    %2028 = vrot.lane.b32.xlu0 %v1760, 94
    %v2029 = vpop.permute.xlu0 %2028
    %2030 = vrot.lane.b32.xlu0 %v1761, 94
    %v2031 = vpop.permute.xlu0 %2030
    %2032 = vrot.lane.b32.xlu0 %v1762, 94
    %v2033 = vpop.permute.xlu0 %2032
    %2034 = vrot.lane.b32.xlu0 %v1763, 94
    %v2035 = vpop.permute.xlu0 %2034
    %2036 = vrot.lane.b32.xlu0 %v1764, 94
    %v2037 = vpop.permute.xlu0 %2036
    %2038 = vrot.lane.b32.xlu0 %v1765, 94
    %v2039 = vpop.permute.xlu0 %2038
    %2040 = vrot.lane.b32.xlu0 %v1766, 94
    %v2041 = vpop.permute.xlu0 %2040
    %2042 = vrot.lane.b32.xlu0 %v1767, 94
    %v2043 = vpop.permute.xlu0 %2042
    %v2044 = vsel %vm320, %v2029, %v2031
    %v2045 = vsel %vm320, %v2031, %v2033
    %v2046 = vsel %vm320, %v2033, %v2035
    %v2047 = vsel %vm320, %v2037, %v2039
    %v2048 = vsel %vm320, %v2039, %v2041
    %v2049 = vsel %vm320, %v2041, %v2043
    %v2060 = vsel %vm320, %v2035, %v2029
    %v2061 = vsel %vm320, %v2043, %v2037
    %2063 = vset.pattern.permute.xlu0 0
    %2064 = vperm.xlu0 %2063, %v1778
    %v2065 = vpop.permute.xlu0 %2064
    %2068 = vset.pattern.permute.xlu0 0
    %2069 = vperm.xlu0 %2068, %v1779
    %v2070 = vpop.permute.xlu0 %2069
    %2073 = vset.pattern.permute.xlu0 0
    %2074 = vperm.xlu0 %2073, %v1780
    %v2075 = vpop.permute.xlu0 %2074
    %2078 = vset.pattern.permute.xlu0 0
    %2079 = vperm.xlu0 %2078, %v1781
    %v2080 = vpop.permute.xlu0 %2079
    %v2083 = vsel %vm359, %v1770, 0
    %v2086 = vsel %vm359, %v1772, 0
    %v2089 = vsel %vm359, %v1774, 0
    %v2092 = vsel %vm359, %v1776, 0
    %2094 = vmatpush.msra.mxu0 %v2013
    %2095 = vmatpush.msra.mxu0 %v2010
    %2096 = vmatpush.msra.mxu0 %v1979
    %2097 = vmatpush.msra.mxu0 %v1976
    %2098 = vmatpush.msra.mxu0 %v1945
    %2099 = vmatpush.msra.mxu0 %v1942
    %2100 = vmatpush.msra.mxu0 %v1911
    %2101 = vmatpush.msra.mxu0 %v1908
    %2102 = vmatpush.msra.mxu0 %v1877
    %2103 = vmatpush.msra.mxu0 %v1874
    %2104 = vmatpush.msra.mxu0 %v1843
    %2105 = vmatpush.msra.mxu0 %v1840
    %2106 = vmatpush.msra.mxu0 %v1809
    %2107 = vmatpush.msra.mxu0 %v1806
    %2108 = vmatpush.msra.mxu0 %v1764
    %2109 = vmatpush.msra.mxu0 %v1760
    %2110 = vmatmul.f32.gmra.mxu0 %v1769
    %v2111 = vpop.f32.mrf.mxu0
    %v2112 = vadd.f32 %v2065, %v2111
    %2113 = vmatmul.f32.gmra.mxu0 %v1771
    %v2114 = vpop.f32.mrf.mxu0
    %v2115 = vadd.f32 %v2070, %v2114
    %2116 = vmatmul.f32.gmra.mxu0 %v1773
    %v2117 = vpop.f32.mrf.mxu0
    %v2118 = vadd.f32 %v2075, %v2117
    %2119 = vmatmul.f32.gmra.mxu0 %v1775
    %v2120 = vpop.f32.mrf.mxu0
    %v2121 = vadd.f32 %v2080, %v2120
    %2122 = vdwg.mxu0
    %2123 = vmatpush.msra.mxu0 0.0
    %2124 = vmatpush.msra.mxu0 0.0
    %2125 = vmatpush.msra.mxu0 0.0
    %2126 = vmatpush.msra.mxu0 0.0
    %2127 = vmatpush.msra.mxu0 0.0
    %2128 = vmatpush.msra.mxu0 0.0
    %2129 = vmatpush.msra.mxu0 0.0
    %2130 = vmatpush.msra.mxu0 0.0
    %2131 = vmatpush.msra.mxu0 0.0
    %2132 = vmatpush.msra.mxu0 0.0
    %2133 = vmatpush.msra.mxu0 0.0
    %2134 = vmatpush.msra.mxu0 0.0
    %2135 = vmatpush.msra.mxu0 0.0
    %2136 = vmatpush.msra.mxu0 0.0
    %2137 = vmatpush.msra.mxu0 %v2047
    %2138 = vmatpush.msra.mxu0 %v2044
    %2139 = vmatmul.f32.gmra.mxu0 %v2083
    %v2140 = vpop.f32.mrf.mxu0
    %v2141 = vadd.f32 %v2112, %v2140
    %2142 = vmatmul.f32.gmra.mxu0 %v2086
    %v2143 = vpop.f32.mrf.mxu0
    %v2144 = vadd.f32 %v2115, %v2143
    %2145 = vmatmul.f32.gmra.mxu0 %v2089
    %v2146 = vpop.f32.mrf.mxu0
    %v2147 = vadd.f32 %v2118, %v2146
    %2148 = vmatmul.f32.gmra.mxu0 %v2092
    %v2149 = vpop.f32.mrf.mxu0
    %v2150 = vadd.f32 %v2121, %v2149
    %2151 = vdwg.mxu0
    %2152 = vmatpush.msra.mxu0 %v2014
    %2153 = vmatpush.msra.mxu0 %v2011
    %2154 = vmatpush.msra.mxu0 %v1980
    %2155 = vmatpush.msra.mxu0 %v1977
    %2156 = vmatpush.msra.mxu0 %v1946
    %2157 = vmatpush.msra.mxu0 %v1943
    %2158 = vmatpush.msra.mxu0 %v1912
    %2159 = vmatpush.msra.mxu0 %v1909
    %2160 = vmatpush.msra.mxu0 %v1878
    %2161 = vmatpush.msra.mxu0 %v1875
    %2162 = vmatpush.msra.mxu0 %v1844
    %2163 = vmatpush.msra.mxu0 %v1841
    %2164 = vmatpush.msra.mxu0 %v1810
    %2165 = vmatpush.msra.mxu0 %v1807
    %2166 = vmatpush.msra.mxu0 %v1765
    %2167 = vmatpush.msra.mxu0 %v1761
    %2168 = vmatmul.f32.gmra.mxu0 %v1769
    %v2169 = vpop.f32.mrf.mxu0
    %v2170 = vadd.f32 %v2065, %v2169
    %2171 = vmatmul.f32.gmra.mxu0 %v1771
    %v2172 = vpop.f32.mrf.mxu0
    %v2173 = vadd.f32 %v2070, %v2172
    %2174 = vmatmul.f32.gmra.mxu0 %v1773
    %v2175 = vpop.f32.mrf.mxu0
    %v2176 = vadd.f32 %v2075, %v2175
    %2177 = vmatmul.f32.gmra.mxu0 %v1775
    %v2178 = vpop.f32.mrf.mxu0
    %v2179 = vadd.f32 %v2080, %v2178
    %2180 = vdwg.mxu0
    %2181 = vmatpush.msra.mxu0 0.0
    %2182 = vmatpush.msra.mxu0 0.0
    %2183 = vmatpush.msra.mxu0 0.0
    %2184 = vmatpush.msra.mxu0 0.0
    %2185 = vmatpush.msra.mxu0 0.0
    %2186 = vmatpush.msra.mxu0 0.0
    %2187 = vmatpush.msra.mxu0 0.0
    %2188 = vmatpush.msra.mxu0 0.0
    %2189 = vmatpush.msra.mxu0 0.0
    %2190 = vmatpush.msra.mxu0 0.0
    %2191 = vmatpush.msra.mxu0 0.0
    %2192 = vmatpush.msra.mxu0 0.0
    %2193 = vmatpush.msra.mxu0 0.0
    %2194 = vmatpush.msra.mxu0 0.0
    %2195 = vmatpush.msra.mxu0 %v2048
    %2196 = vmatpush.msra.mxu0 %v2045
    %2197 = vmatmul.f32.gmra.mxu0 %v2083
    %v2198 = vpop.f32.mrf.mxu0
    %v2199 = vadd.f32 %v2170, %v2198
    %2200 = vmatmul.f32.gmra.mxu0 %v2086
    %v2201 = vpop.f32.mrf.mxu0
    %v2202 = vadd.f32 %v2173, %v2201
    %2203 = vmatmul.f32.gmra.mxu0 %v2089
    %v2204 = vpop.f32.mrf.mxu0
    %v2205 = vadd.f32 %v2176, %v2204
    %2206 = vmatmul.f32.gmra.mxu0 %v2092
    %v2207 = vpop.f32.mrf.mxu0
    %v2208 = vadd.f32 %v2179, %v2207
    %2209 = vdwg.mxu0
    %2210 = vmatpush.msra.mxu0 %v2015
    %2211 = vmatpush.msra.mxu0 %v2012
    %2212 = vmatpush.msra.mxu0 %v1981
    %2213 = vmatpush.msra.mxu0 %v1978
    %2214 = vmatpush.msra.mxu0 %v1947
    %2215 = vmatpush.msra.mxu0 %v1944
    %2216 = vmatpush.msra.mxu0 %v1913
    %2217 = vmatpush.msra.mxu0 %v1910
    %2218 = vmatpush.msra.mxu0 %v1879
    %2219 = vmatpush.msra.mxu0 %v1876
    %2220 = vmatpush.msra.mxu0 %v1845
    %2221 = vmatpush.msra.mxu0 %v1842
    %2222 = vmatpush.msra.mxu0 %v1811
    %2223 = vmatpush.msra.mxu0 %v1808
    %2224 = vmatpush.msra.mxu0 %v1766
    %2225 = vmatpush.msra.mxu0 %v1762
    %2226 = vmatmul.f32.gmra.mxu0 %v1769
    %v2227 = vpop.f32.mrf.mxu0
    %v2228 = vadd.f32 %v2065, %v2227
    %2229 = vmatmul.f32.gmra.mxu0 %v1771
    %v2230 = vpop.f32.mrf.mxu0
    %v2231 = vadd.f32 %v2070, %v2230
    %2232 = vmatmul.f32.gmra.mxu0 %v1773
    %v2233 = vpop.f32.mrf.mxu0
    %v2234 = vadd.f32 %v2075, %v2233
    %2235 = vmatmul.f32.gmra.mxu0 %v1775
    %v2236 = vpop.f32.mrf.mxu0
    %v2237 = vadd.f32 %v2080, %v2236
    %2238 = vdwg.mxu0
    %2239 = vmatpush.msra.mxu0 0.0
    %2240 = vmatpush.msra.mxu0 0.0
    %2241 = vmatpush.msra.mxu0 0.0
    %2242 = vmatpush.msra.mxu0 0.0
    %2243 = vmatpush.msra.mxu0 0.0
    %2244 = vmatpush.msra.mxu0 0.0
    %2245 = vmatpush.msra.mxu0 0.0
    %2246 = vmatpush.msra.mxu0 0.0
    %2247 = vmatpush.msra.mxu0 0.0
    %2248 = vmatpush.msra.mxu0 0.0
    %2249 = vmatpush.msra.mxu0 0.0
    %2250 = vmatpush.msra.mxu0 0.0
    %2251 = vmatpush.msra.mxu0 0.0
    %2252 = vmatpush.msra.mxu0 0.0
    %2253 = vmatpush.msra.mxu0 %v2049
    %2254 = vmatpush.msra.mxu0 %v2046
    %2255 = vmatmul.f32.gmra.mxu0 %v2083
    %v2256 = vpop.f32.mrf.mxu0
    %v2257 = vadd.f32 %v2228, %v2256
    %2258 = vmatmul.f32.gmra.mxu0 %v2086
    %v2259 = vpop.f32.mrf.mxu0
    %v2260 = vadd.f32 %v2231, %v2259
    %2261 = vmatmul.f32.gmra.mxu0 %v2089
    %v2262 = vpop.f32.mrf.mxu0
    %v2263 = vadd.f32 %v2234, %v2262
    %2264 = vmatmul.f32.gmra.mxu0 %v2092
    %v2265 = vpop.f32.mrf.mxu0
    %v2266 = vadd.f32 %v2237, %v2265
    %2267 = vdwg.mxu0
    %2268 = vmatpush.msra.mxu0 %v2027
    %2269 = vmatpush.msra.mxu0 %v2026
    %2270 = vmatpush.msra.mxu0 %v1993
    %2271 = vmatpush.msra.mxu0 %v1992
    %2272 = vmatpush.msra.mxu0 %v1959
    %2273 = vmatpush.msra.mxu0 %v1958
    %2274 = vmatpush.msra.mxu0 %v1925
    %2275 = vmatpush.msra.mxu0 %v1924
    %2276 = vmatpush.msra.mxu0 %v1891
    %2277 = vmatpush.msra.mxu0 %v1890
    %2278 = vmatpush.msra.mxu0 %v1857
    %2279 = vmatpush.msra.mxu0 %v1856
    %2280 = vmatpush.msra.mxu0 %v1823
    %2281 = vmatpush.msra.mxu0 %v1822
    %2282 = vmatpush.msra.mxu0 %v1767
    %2283 = vmatpush.msra.mxu0 %v1763
    %2284 = vmatmul.f32.gmra.mxu0 %v1769
    %v2285 = vpop.f32.mrf.mxu0
    %v2286 = vadd.f32 %v2065, %v2285
    %2287 = vmatmul.f32.gmra.mxu0 %v1771
    %v2288 = vpop.f32.mrf.mxu0
    %v2289 = vadd.f32 %v2070, %v2288
    %2290 = vmatmul.f32.gmra.mxu0 %v1773
    %v2291 = vpop.f32.mrf.mxu0
    %v2292 = vadd.f32 %v2075, %v2291
    %2293 = vmatmul.f32.gmra.mxu0 %v1775
    %v2294 = vpop.f32.mrf.mxu0
    %v2295 = vadd.f32 %v2080, %v2294
    %2296 = vdwg.mxu0
    %2297 = vmatpush.msra.mxu0 0.0
    %2298 = vmatpush.msra.mxu0 0.0
    %2299 = vmatpush.msra.mxu0 0.0
    %2300 = vmatpush.msra.mxu0 0.0
    %2301 = vmatpush.msra.mxu0 0.0
    %2302 = vmatpush.msra.mxu0 0.0
    %2303 = vmatpush.msra.mxu0 0.0
    %2304 = vmatpush.msra.mxu0 0.0
    %2305 = vmatpush.msra.mxu0 0.0
    %2306 = vmatpush.msra.mxu0 0.0
    %2307 = vmatpush.msra.mxu0 0.0
    %2308 = vmatpush.msra.mxu0 0.0
    %2309 = vmatpush.msra.mxu0 0.0
    %2310 = vmatpush.msra.mxu0 0.0
    %2311 = vmatpush.msra.mxu0 %v2061
    %2312 = vmatpush.msra.mxu0 %v2060
    %2313 = vmatmul.f32.gmra.mxu0 %v2083
    %v2314 = vpop.f32.mrf.mxu0
    %v2315 = vadd.f32 %v2286, %v2314
    %2316 = vmatmul.f32.gmra.mxu0 %v2086
    %v2317 = vpop.f32.mrf.mxu0
    %v2318 = vadd.f32 %v2289, %v2317
    %2319 = vmatmul.f32.gmra.mxu0 %v2089
    %v2320 = vpop.f32.mrf.mxu0
    %v2321 = vadd.f32 %v2292, %v2320
    %2322 = vmatmul.f32.gmra.mxu0 %v2092
    %v2323 = vpop.f32.mrf.mxu0
    %v2324 = vadd.f32 %v2295, %v2323
    %2325 = vdwg.mxu0
    %v2326 = vmax.f32 %v2141, 0.0
    %v2327 = vmax.f32 %v2199, 0.0
    %v2328 = vmax.f32 %v2257, 0.0
    %v2329 = vmax.f32 %v2315, 0.0
    %v2330 = vmax.f32 %v2144, 0.0
    %v2331 = vmax.f32 %v2202, 0.0
    %v2332 = vmax.f32 %v2260, 0.0
    %v2333 = vmax.f32 %v2318, 0.0
    %v2334 = vadd.f32 %v2326, %v2147
    %v2335 = vadd.f32 %v2327, %v2205
    %v2336 = vadd.f32 %v2328, %v2263
    %v2337 = vadd.f32 %v2329, %v2321
    %v2338 = vadd.f32 %v2330, %v2150
    %v2339 = vadd.f32 %v2331, %v2208
    %v2340 = vadd.f32 %v2332, %v2266
    %v2341 = vadd.f32 %v2333, %v2324
    %2342 = vst [vmem:[#allocation5] sm:$0xff] %v2334
    %2343 = vst [vmem:[#allocation5 + $0x8] sm:$0xff] %v2335
    %2344 = vst [vmem:[#allocation5 + $0x10] sm:$0xff] %v2336
    %2345 = vst [vmem:[#allocation5 + $0x18] sm:$0xff] %v2337
    %2346 = vst [vmem:[#allocation5 + $0x20] sm:$0xff] %v2338
    %2347 = vst [vmem:[#allocation5 + $0x28] sm:$0xff] %v2339
    %2348 = vst [vmem:[#allocation5 + $0x30] sm:$0xff] %v2340
    %2349 = vst [vmem:[#allocation5 + $0x38] sm:$0xff] %v2341
    // Predicated region
    $region18: #{tpu_custom_call.1} parent=1 // pred_check
      _
    $region19: #{tpu_custom_call.1} parent=1 // pred_check_branch
      %2351 = sbr.rel (0) target = $region21
    $region20: #{tpu_custom_call.1} parent=1 // pred_region
      %2353 = vsyncadd [#allocation4], 0
      %s2354 = sshll.u32 [#allocation5], 4
      %s2355 = int_to_ptr.vmem [resolvable:$true] %s2354
      %s2356 = sshll.u32 %s3, 4
      %s2357 = int_to_ptr.hbm [resolvable:$true] %s2356
      %2362 = dma.vmem_to_hbm [thread:$0]  %s2355, 1024, %s2357, [#allocation4], 512, 512, 32
    $region21: #{tpu_custom_call.1} parent=1 // pred_fallthru
      _
    // Predicated region
    $region22: #{tpu_custom_call.1} parent=1 // pred_check
      _
    $region23: #{tpu_custom_call.1} parent=1 // pred_check_branch
      %2364 = sbr.rel (0) target = $region25
    $region24: #{tpu_custom_call.1} parent=1 // pred_region
      %2366 = dma.done [#allocation4], 1024
    $region25: #{tpu_custom_call.1} parent=1 // pred_fallthru
      _
    %2367 = vsyncpa [#allocation3], 1
    %2368 = vsyncpa [#allocation4], 1

</llo_original>
